<compile_context>
chip_gen: v5e
topology: v5e:2x2
jax: 0.10.0
libtpu: 0.0.40
codegen_flags: <defaults>
</compile_context>

<pallas_src>
import functools

import numpy as np
import jax
import jax.numpy as jnp
from jax import lax
from jax.experimental import pallas as pl
from jax.experimental.pallas import tpu as pltpu

TB = 8  # images per grid step (keeps every block (8,128)-legal; S matrices scale as TB^2)


# ----------------------------------------------------------------------------
# Pallas kernels
# ----------------------------------------------------------------------------
def _conv_relu_pool_kernel(x_ref, wd_ref, b_ref, s_ref, o_ref, *, acc_rows):
    """Fused 3x3 conv (3 banded matmuls) + bias + ReLU + 2x2 maxpool.

    x_ref : (TB*Hp, Wp*Cin)          bf16  zero-padded input rows for TB images
    wd_ref: (3, Wp*Cin, 2*half)      bf16  banded weights, one slab per kernel row dh
    b_ref : (1, 2*half)              f32   bias row (zero on pad columns)
    s_ref : (2, out_rows, acc_rows)  bf16  0/1 row-selection (even / odd pool row)
    o_ref : (out_rows, half)         bf16  pooled output (zero-padded for next layer)
    """
    half = o_ref.shape[1]
    # conv: accumulate the three kernel-row contributions in f32 on the MXU.
    acc = jnp.dot(x_ref[pl.ds(0, acc_rows), :], wd_ref[0],
                  preferred_element_type=jnp.float32)
    acc = acc + jnp.dot(x_ref[pl.ds(1, acc_rows), :], wd_ref[1],
                        preferred_element_type=jnp.float32)
    acc = acc + jnp.dot(x_ref[pl.ds(2, acc_rows), :], wd_ref[2],
                        preferred_element_type=jnp.float32)
    acc = acc + b_ref[...]
    acc = jnp.maximum(acc, 0.0)
    # W-direction pool: even-w / odd-w results live in separate 128-wide halves.
    pooled_w = jnp.maximum(acc[:, :half], acc[:, half:]).astype(jnp.bfloat16)
    # H-direction pool + row compaction (+ zero rows for next layer's padding):
    # exact 0/1 selection matmuls, then elementwise max.
    even = jnp.dot(s_ref[0], pooled_w, preferred_element_type=jnp.float32)
    odd = jnp.dot(s_ref[1], pooled_w, preferred_element_type=jnp.float32)
    o_ref[...] = jnp.maximum(even, odd).astype(o_ref.dtype)


def _fc_kernel(x_ref, w_ref, b_ref, o_ref):
    acc = jnp.dot(x_ref[...], w_ref[...], preferred_element_type=jnp.float32)
    o_ref[...] = (acc + b_ref[...]).astype(o_ref.dtype)


# ----------------------------------------------------------------------------
# Pallas wrappers
# ----------------------------------------------------------------------------
def conv_relu_pool(x2, wd, bias_row, sel, *, hp, tb=TB):
    """x2: (n_tiles*tb*hp, wp*cin) bf16 -> (n_tiles*out_rows, half) bf16."""
    rows_total, k = x2.shape
    block_rows = tb * hp
    n_tiles = rows_total // block_rows
    acc_rows = block_rows - 2
    _, out_rows, sel_cols = sel.shape
    assert sel_cols == acc_rows
    half = wd.shape[2] // 2

    kernel = functools.partial(_conv_relu_pool_kernel, acc_rows=acc_rows)
    flops = 2 * n_tiles * (3 * acc_rows * k * 2 * half
                           + 2 * out_rows * acc_rows * half)
    bytes_accessed = (x2.size * 2 + wd.size * 2 + sel.size * 2
                      + bias_row.size * 4 + n_tiles * out_rows * half * 2)
    return pl.pallas_call(
        kernel,
        out_shape=jax.ShapeDtypeStruct((n_tiles * out_rows, half), jnp.bfloat16),
        grid=(n_tiles,),
        in_specs=[
            pl.BlockSpec((block_rows, k), lambda i: (i, 0)),
            pl.BlockSpec(wd.shape, lambda i: (0, 0, 0)),
            pl.BlockSpec(bias_row.shape, lambda i: (0, 0)),
            pl.BlockSpec(sel.shape, lambda i: (0, 0, 0)),
        ],
        out_specs=pl.BlockSpec((out_rows, half), lambda i: (i, 0)),
        compiler_params=pltpu.CompilerParams(
            dimension_semantics=("parallel",)),
        cost_estimate=pl.CostEstimate(flops=flops, transcendentals=0,
                                      bytes_accessed=bytes_accessed),
    )(x2, wd, bias_row, sel)


def fc(x, w, b, *, tb=TB):
    n, k = x.shape
    nc = w.shape[1]
    n_tiles = n // tb
    return pl.pallas_call(
        _fc_kernel,
        out_shape=jax.ShapeDtypeStruct((n, nc), jnp.float32),
        grid=(n_tiles,),
        in_specs=[
            pl.BlockSpec((tb, k), lambda i: (i, 0)),
            pl.BlockSpec((k, nc), lambda i: (0, 0)),
            pl.BlockSpec((1, nc), lambda i: (0, 0)),
        ],
        out_specs=pl.BlockSpec((tb, nc), lambda i: (i, 0)),
        compiler_params=pltpu.CompilerParams(
            dimension_semantics=("parallel",)),
    )(x, w, b)


# ----------------------------------------------------------------------------
# One-time host-side construction of banded weights / selection matrices
# ----------------------------------------------------------------------------
def _banded_conv_weights(w_hwio, wp, col_group_offset, half):
    """3x3 conv as 3 banded matmuls on the (rows=H, lanes=W*Cin) layout.

    Output pixel w=2*wo+parity, channel co lands at column
    parity*half + (wo+col_group_offset)*Cout + co.  Uncovered columns stay zero
    (they become the next layer's zero padding)."""
    kh, kw, cin, cout = w_hwio.shape
    w_img = wp - 2
    out = np.zeros((kh, wp * cin, 2 * half), np.float32)
    for dh in range(kh):
        for dw in range(kw):
            for w in range(w_img):
                wo, parity = divmod(w, 2)
                col = parity * half + (wo + col_group_offset) * cout
                row = (w + dw) * cin
                out[dh, row:row + cin, col:col + cout] = w_hwio[dh, dw]
    return out


def _bias_row(b, wp, col_group_offset, half):
    cout = b.shape[0]
    w_img = wp - 2
    out = np.zeros((1, 2 * half), np.float32)
    for w in range(w_img):
        wo, parity = divmod(w, 2)
        col = parity * half + (wo + col_group_offset) * cout
        out[0, col:col + cout] = b
    return out


def _row_select(tb, hp, row_group_offset, out_rows_per_img):
    """0/1 matrices picking the even / odd conv row of every 2x2 pool window.

    Output row n*out_rows_per_img + ho + row_group_offset selects conv row
    n*hp + 2*ho (the odd matrix selects +1).  Uncovered rows stay zero (they
    become the next layer's zero row padding)."""
    h_img = hp - 2
    ho_n = h_img // 2
    acc_rows = tb * hp - 2
    sel = np.zeros((2, tb * out_rows_per_img, acc_rows), np.float32)
    for n in range(tb):
        for ho in range(ho_n):
            orow = n * out_rows_per_img + ho + row_group_offset
            sel[0, orow, n * hp + 2 * ho] = 1.0
            sel[1, orow, n * hp + 2 * ho + 1] = 1.0
    return sel


def _fc_weight_nhwc_padded(wfc):
    """PyTorch (c*49+h*7+w)-ordered fc weight -> kernel layout (h*128 + w*16 + c),
    zero rows at the 16 pad lanes per image row."""
    w = np.asarray(wfc, np.float32).reshape(16, 7, 7, 10)      # (c, h, w, k)
    w = np.transpose(w, (1, 2, 0, 3)).reshape(7, 7 * 16, 10)   # (h, w*16+c, k)
    out = np.zeros((7, 128, 10), np.float32)
    out[:, :7 * 16, :] = w
    return out.reshape(7 * 128, 10)


def prepare_kernel_params(params, tb=TB):
    w1 = np.asarray(params["w1"], np.float32)
    b1 = np.asarray(params["b1"], np.float32)
    w2 = np.asarray(params["w2"], np.float32)
    b2 = np.asarray(params["b2"], np.float32)
    wfc = np.asarray(params["wfc"], np.float32)
    bfc = np.asarray(params["bfc"], np.float32)
    bf16 = jnp.bfloat16
    return dict(
        # conv1: 28x28x1 -> pool -> written directly as conv2's padded 16x(16*8) input
        wd1=jnp.asarray(_banded_conv_weights(w1, wp=30, col_group_offset=1, half=128), bf16),
        bias1=jnp.asarray(_bias_row(b1, wp=30, col_group_offset=1, half=128)),
        sel1=jnp.asarray(_row_select(tb, hp=30, row_group_offset=1, out_rows_per_img=16), bf16),
        # conv2: 14x14x8 -> pool -> 7x(7*16) (lane-padded to 128)
        wd2=jnp.asarray(_banded_conv_weights(w2, wp=16, col_group_offset=0, half=128), bf16),
        bias2=jnp.asarray(_bias_row(b2, wp=16, col_group_offset=0, half=128)),
        sel2=jnp.asarray(_row_select(tb, hp=16, row_group_offset=0, out_rows_per_img=7), bf16),
        # fc: NCHW flatten folded into a one-time weight permutation
        wfc=jnp.asarray(_fc_weight_nhwc_padded(wfc), bf16),
        bfc=jnp.asarray(bfc.reshape(1, 10)),
    )


# ----------------------------------------------------------------------------
# Forward pass (matches the PyTorch module semantics, bf16 inputs / f32 accum)
# ----------------------------------------------------------------------------
def init_params(key):
    k = jax.random.split(key, 6)
    # HWIO conv weights (KH, KW, Cin, Cout); fc weight indexed by (c,h,w)-flat input.
    return dict(
        w1=jax.random.normal(k[0], (3, 3, 1, 8), jnp.float32) * 0.2,
        b1=jax.random.normal(k[1], (8,), jnp.float32) * 0.1,
        w2=jax.random.normal(k[2], (3, 3, 8, 16), jnp.float32) * 0.1,
        b2=jax.random.normal(k[3], (16,), jnp.float32) * 0.1,
        wfc=jax.random.normal(k[4], (16 * 7 * 7, 10), jnp.float32) * 0.05,
        bfc=jax.random.normal(k[5], (10,), jnp.float32) * 0.1,
    )


@jax.jit
def cnn_forward(x_nchw, prep):
    n = x_nchw.shape[0]
    n_pad = pl.cdiv(n, TB) * TB
    # NCHW (N,1,28,28) -> padded 2D rows=(n_pad*30), lanes=(30*1), bf16.
    x = x_nchw.reshape(n, 28, 28).astype(jnp.bfloat16)
    x = jnp.pad(x, ((0, n_pad - n), (1, 1), (1, 1)))            # (n_pad, 30, 30)
    x2 = x.reshape(n_pad * 30, 30)

    h1 = conv_relu_pool(x2, prep["wd1"], prep["bias1"], prep["sel1"], hp=30)  # (n_pad*16, 128)
    h2 = conv_relu_pool(h1, prep["wd2"], prep["bias2"], prep["sel2"], hp=16)  # (n_pad*7, 128)

    flat = h2.reshape(n_pad, 7 * 128)                           # free, contiguous reshape
    logits = fc(flat, prep["wfc"], prep["bfc"])                 # (n_pad, 10) f32
    return logits[:n]


# ----------------------------------------------------------------------------
# Pure-JAX reference (quantization points match the kernels when match_bf16=True)
# ----------------------------------------------------------------------------
def cnn_reference(x_nchw, params, *, match_bf16=True):
    def rb(v):
        return v.astype(jnp.bfloat16).astype(jnp.float32) if match_bf16 else v

    n = x_nchw.shape[0]
    x = jnp.transpose(x_nchw, (0, 2, 3, 1)).astype(jnp.float32)
    dn = ("NHWC", "HWIO", "NHWC")
    hi = lax.Precision.HIGHEST

    h = lax.conv_general_dilated(rb(x), rb(params["w1"]), (1, 1), "SAME",
                                 dimension_numbers=dn, precision=hi) + params["b1"]
    h = jnp.maximum(h, 0.0)
    h = lax.reduce_window(h, -jnp.inf, lax.max, (1, 2, 2, 1), (1, 2, 2, 1), "VALID")
    h = rb(h)

    h = lax.conv_general_dilated(h, rb(params["w2"]), (1, 1), "SAME",
                                 dimension_numbers=dn, precision=hi) + params["b2"]
    h = jnp.maximum(h, 0.0)
    h = lax.reduce_window(h, -jnp.inf, lax.max, (1, 2, 2, 1), (1, 2, 2, 1), "VALID")
    h = rb(h)

    flat = jnp.transpose(h, (0, 3, 1, 2)).reshape(n, 16 * 7 * 7)  # PyTorch NCHW flatten
    return jnp.dot(flat, rb(params["wfc"]), precision=hi) + params["bfc"]


if __name__ == "__main__":
    key = jax.random.PRNGKey(0)
    kx, kp = jax.random.split(key)
    # Spatial 28x28 is implied by fc1 = Linear(16*7*7, 10); keep the batch small.
    x = jax.random.normal(kx, (4, 1, 28, 28), jnp.float32)
    params = init_params(kp)
    prep = prepare_kernel_params(params)

    out = jax.block_until_ready(cnn_forward(x, prep))
    assert out.shape == (4, 10) and out.dtype == jnp.float32

    # Kernel math must match a reference quantized at the same bf16 points
    # (differences are only f32 accumulation order).
    ref_bf16 = jax.block_until_ready(cnn_reference(x, params, match_bf16=True))
    err = float(jnp.max(jnp.abs(out - ref_bf16)))
    assert err < 1e-3, f"mismatch vs bf16-matched reference: {err}"

    # Sanity: still close to the pure-f32 PyTorch-equivalent forward pass.
    ref_f32 = jax.block_until_ready(cnn_reference(x, params, match_bf16=False))
    err32 = float(jnp.max(jnp.abs(out - ref_f32)))
    assert err32 < 0.25, f"mismatch vs f32 reference: {err32}"

    print("KERNEL_OK")
</pallas_src>

<mosaic_0001>
module attributes {stable_mosaic.version = 11 : i64} {
  func.func @_conv_relu_pool_kernel(%arg0: i32, %arg1: memref<128x128xbf16, #tpu.memory_space<vmem>>, %arg2: memref<3x128x256xbf16, #tpu.memory_space<vmem>>, %arg3: memref<1x256xf32, #tpu.memory_space<vmem>>, %arg4: memref<2x56x126xbf16, #tpu.memory_space<vmem>>, %arg5: memref<56x128xbf16, #tpu.memory_space<vmem>>) attributes {dimension_semantics = [#tpu.dimension_semantics<parallel>], iteration_bounds = array<i64: 1>, scalar_prefetch = 0 : i64, scratch_operands = 0 : i64, tpu.core_type = #tpu.core_type<tc>, window_params = [{transform_indices = @transform_0, window_bounds = array<i64: 128, 128>}, {pipeline_mode = #tpu.pipeline_mode<synchronous>, transform_indices = @transform_1, window_bounds = array<i64: 3, 128, 256>}, {pipeline_mode = #tpu.pipeline_mode<synchronous>, transform_indices = @transform_2, window_bounds = array<i64: 1, 256>}, {pipeline_mode = #tpu.pipeline_mode<synchronous>, transform_indices = @transform_3, window_bounds = array<i64: 2, 56, 126>}, {transform_indices = @transform_4, window_bounds = array<i64: 56, 128>}]} {
    %c0 = arith.constant 0 : index
    %c0_0 = arith.constant 0 : index
    %0 = vector.load %arg1[%c0, %c0_0] : memref<128x128xbf16, #tpu.memory_space<vmem>>, vector<126x128xbf16>
    %c0_1 = arith.constant 0 : index
    %c0_2 = arith.constant 0 : index
    %c0_3 = arith.constant 0 : index
    %1 = vector.load %arg2[%c0_1, %c0_2, %c0_3] : memref<3x128x256xbf16, #tpu.memory_space<vmem>>, vector<1x128x256xbf16>
    %2 = vector.shape_cast %1 : vector<1x128x256xbf16> to vector<128x256xbf16>
    %cst = arith.constant dense<0.000000e+00> : vector<126x256xf32>
    %3 = tpu.matmul %0, %2, %cst {dimension_numbers = #tpu.dot_dimension_numbers<[1], [0], [0], [1], [0, 0, 1, 1], [], []>} : vector<126x128xbf16>, vector<128x256xbf16>, vector<126x256xf32> -> vector<126x256xf32>
    %c1 = arith.constant 1 : index
    %c0_4 = arith.constant 0 : index
    %4 = vector.load %arg1[%c1, %c0_4] : memref<128x128xbf16, #tpu.memory_space<vmem>>, vector<126x128xbf16>
    %c1_5 = arith.constant 1 : index
    %c0_6 = arith.constant 0 : index
    %c0_7 = arith.constant 0 : index
    %5 = vector.load %arg2[%c1_5, %c0_6, %c0_7] : memref<3x128x256xbf16, #tpu.memory_space<vmem>>, vector<1x128x256xbf16>
    %6 = vector.shape_cast %5 : vector<1x128x256xbf16> to vector<128x256xbf16>
    %cst_8 = arith.constant dense<0.000000e+00> : vector<126x256xf32>
    %7 = tpu.matmul %4, %6, %cst_8 {dimension_numbers = #tpu.dot_dimension_numbers<[1], [0], [0], [1], [0, 0, 1, 1], [], []>} : vector<126x128xbf16>, vector<128x256xbf16>, vector<126x256xf32> -> vector<126x256xf32>
    %8 = arith.addf %3, %7 : vector<126x256xf32>
    %c2 = arith.constant 2 : index
    %c0_9 = arith.constant 0 : index
    %9 = vector.load %arg1[%c2, %c0_9] : memref<128x128xbf16, #tpu.memory_space<vmem>>, vector<126x128xbf16>
    %c2_10 = arith.constant 2 : index
    %c0_11 = arith.constant 0 : index
    %c0_12 = arith.constant 0 : index
    %10 = vector.load %arg2[%c2_10, %c0_11, %c0_12] : memref<3x128x256xbf16, #tpu.memory_space<vmem>>, vector<1x128x256xbf16>
    %11 = vector.shape_cast %10 : vector<1x128x256xbf16> to vector<128x256xbf16>
    %cst_13 = arith.constant dense<0.000000e+00> : vector<126x256xf32>
    %12 = tpu.matmul %9, %11, %cst_13 {dimension_numbers = #tpu.dot_dimension_numbers<[1], [0], [0], [1], [0, 0, 1, 1], [], []>} : vector<126x128xbf16>, vector<128x256xbf16>, vector<126x256xf32> -> vector<126x256xf32>
    %13 = arith.addf %8, %12 : vector<126x256xf32>
    %c0_14 = arith.constant 0 : index
    %c0_15 = arith.constant 0 : index
    %14 = vector.load %arg3[%c0_14, %c0_15] : memref<1x256xf32, #tpu.memory_space<vmem>>, vector<1x256xf32>
    %15 = vector.broadcast %14 : vector<1x256xf32> to vector<126x256xf32>
    %16 = arith.addf %13, %15 : vector<126x256xf32>
    %cst_16 = arith.constant 0.000000e+00 : f32
    %17 = vector.broadcast %cst_16 : f32 to vector<126x256xf32>
    %18 = arith.maximumf %16, %17 : vector<126x256xf32>
    %19 = vector.extract_strided_slice %18 {offsets = [0, 0], sizes = [126, 128], strides = [1, 1]} : vector<126x256xf32> to vector<126x128xf32>
    %20 = vector.extract_strided_slice %18 {offsets = [0, 128], sizes = [126, 128], strides = [1, 1]} : vector<126x256xf32> to vector<126x128xf32>
    %21 = arith.maximumf %19, %20 : vector<126x128xf32>
    %22 = arith.truncf %21 : vector<126x128xf32> to vector<126x128xbf16>
    %c0_17 = arith.constant 0 : index
    %c0_18 = arith.constant 0 : index
    %c0_19 = arith.constant 0 : index
    %23 = vector.load %arg4[%c0_17, %c0_18, %c0_19] : memref<2x56x126xbf16, #tpu.memory_space<vmem>>, vector<1x56x126xbf16>
    %24 = vector.shape_cast %23 : vector<1x56x126xbf16> to vector<56x126xbf16>
    %cst_20 = arith.constant dense<0.000000e+00> : vector<56x128xf32>
    %25 = tpu.matmul %24, %22, %cst_20 {dimension_numbers = #tpu.dot_dimension_numbers<[1], [0], [0], [1], [0, 0, 1, 1], [], []>} : vector<56x126xbf16>, vector<126x128xbf16>, vector<56x128xf32> -> vector<56x128xf32>
    %c1_21 = arith.constant 1 : index
    %c0_22 = arith.constant 0 : index
    %c0_23 = arith.constant 0 : index
    %26 = vector.load %arg4[%c1_21, %c0_22, %c0_23] : memref<2x56x126xbf16, #tpu.memory_space<vmem>>, vector<1x56x126xbf16>
    %27 = vector.shape_cast %26 : vector<1x56x126xbf16> to vector<56x126xbf16>
    %cst_24 = arith.constant dense<0.000000e+00> : vector<56x128xf32>
    %28 = tpu.matmul %27, %22, %cst_24 {dimension_numbers = #tpu.dot_dimension_numbers<[1], [0], [0], [1], [0, 0, 1, 1], [], []>} : vector<56x126xbf16>, vector<126x128xbf16>, vector<56x128xf32> -> vector<56x128xf32>
    %29 = arith.maximumf %25, %28 : vector<56x128xf32>
    %30 = arith.truncf %29 : vector<56x128xf32> to vector<56x128xbf16>
    %c0_25 = arith.constant 0 : index
    %c0_26 = arith.constant 0 : index
    %31 = vector.load %arg5[%c0_25, %c0_26] : memref<56x128xbf16, #tpu.memory_space<vmem>>, vector<56x128xbf16>
    tpu.vector_store %arg5[%c0_25, %c0_26], %30 {strides = array<i32>} : memref<56x128xbf16, #tpu.memory_space<vmem>>, vector<56x128xbf16>,
    return
  }
  func.func @transform_0(%arg0: i32) -> (i32, i32) {
    %c0_i32 = arith.constant 0 : i32
    %c0_i32_0 = arith.constant 0 : i32
    return %arg0, %c0_i32 : i32, i32
  }
  func.func @transform_1(%arg0: i32) -> (i32, i32, i32) {
    %c0_i32 = arith.constant 0 : i32
    %c0_i32_0 = arith.constant 0 : i32
    %c0_i32_1 = arith.constant 0 : i32
    %c0_i32_2 = arith.constant 0 : i32
    return %c0_i32, %c0_i32_0, %c0_i32_1 : i32, i32, i32
  }
  func.func @transform_2(%arg0: i32) -> (i32, i32) {
    %c0_i32 = arith.constant 0 : i32
    %c0_i32_0 = arith.constant 0 : i32
    %c0_i32_1 = arith.constant 0 : i32
    return %c0_i32, %c0_i32_0 : i32, i32
  }
  func.func @transform_3(%arg0: i32) -> (i32, i32, i32) {
    %c0_i32 = arith.constant 0 : i32
    %c0_i32_0 = arith.constant 0 : i32
    %c0_i32_1 = arith.constant 0 : i32
    %c0_i32_2 = arith.constant 0 : i32
    return %c0_i32, %c0_i32_0, %c0_i32_1 : i32, i32, i32
  }
  func.func @transform_4(%arg0: i32) -> (i32, i32) {
    %c0_i32 = arith.constant 0 : i32
    %c0_i32_0 = arith.constant 0 : i32
    return %arg0, %c0_i32 : i32, i32
  }
}

module attributes {stable_mosaic.version = 11 : i64} {
  func.func @_conv_relu_pool_kernel(%arg0: i32, %arg1: memref<240x30xbf16, #tpu.memory_space<vmem>>, %arg2: memref<3x30x256xbf16, #tpu.memory_space<vmem>>, %arg3: memref<1x256xf32, #tpu.memory_space<vmem>>, %arg4: memref<2x128x238xbf16, #tpu.memory_space<vmem>>, %arg5: memref<128x128xbf16, #tpu.memory_space<vmem>>) attributes {dimension_semantics = [#tpu.dimension_semantics<parallel>], iteration_bounds = array<i64: 1>, scalar_prefetch = 0 : i64, scratch_operands = 0 : i64, tpu.core_type = #tpu.core_type<tc>, window_params = [{transform_indices = @transform_0, window_bounds = array<i64: 240, 30>}, {pipeline_mode = #tpu.pipeline_mode<synchronous>, transform_indices = @transform_1, window_bounds = array<i64: 3, 30, 256>}, {pipeline_mode = #tpu.pipeline_mode<synchronous>, transform_indices = @transform_2, window_bounds = array<i64: 1, 256>}, {pipeline_mode = #tpu.pipeline_mode<synchronous>, transform_indices = @transform_3, window_bounds = array<i64: 2, 128, 238>}, {transform_indices = @transform_4, window_bounds = array<i64: 128, 128>}]} {
    %c0 = arith.constant 0 : index
    %c0_0 = arith.constant 0 : index
    %0 = vector.load %arg1[%c0, %c0_0] : memref<240x30xbf16, #tpu.memory_space<vmem>>, vector<238x30xbf16>
    %c0_1 = arith.constant 0 : index
    %c0_2 = arith.constant 0 : index
    %c0_3 = arith.constant 0 : index
    %1 = vector.load %arg2[%c0_1, %c0_2, %c0_3] : memref<3x30x256xbf16, #tpu.memory_space<vmem>>, vector<1x30x256xbf16>
    %2 = vector.shape_cast %1 : vector<1x30x256xbf16> to vector<30x256xbf16>
    %cst = arith.constant dense<0.000000e+00> : vector<238x256xf32>
    %3 = tpu.matmul %0, %2, %cst {dimension_numbers = #tpu.dot_dimension_numbers<[1], [0], [0], [1], [0, 0, 1, 1], [], []>} : vector<238x30xbf16>, vector<30x256xbf16>, vector<238x256xf32> -> vector<238x256xf32>
    %c1 = arith.constant 1 : index
    %c0_4 = arith.constant 0 : index
    %4 = vector.load %arg1[%c1, %c0_4] : memref<240x30xbf16, #tpu.memory_space<vmem>>, vector<238x30xbf16>
    %c1_5 = arith.constant 1 : index
    %c0_6 = arith.constant 0 : index
    %c0_7 = arith.constant 0 : index
    %5 = vector.load %arg2[%c1_5, %c0_6, %c0_7] : memref<3x30x256xbf16, #tpu.memory_space<vmem>>, vector<1x30x256xbf16>
    %6 = vector.shape_cast %5 : vector<1x30x256xbf16> to vector<30x256xbf16>
    %cst_8 = arith.constant dense<0.000000e+00> : vector<238x256xf32>
    %7 = tpu.matmul %4, %6, %cst_8 {dimension_numbers = #tpu.dot_dimension_numbers<[1], [0], [0], [1], [0, 0, 1, 1], [], []>} : vector<238x30xbf16>, vector<30x256xbf16>, vector<238x256xf32> -> vector<238x256xf32>
    %8 = arith.addf %3, %7 : vector<238x256xf32>
    %c2 = arith.constant 2 : index
    %c0_9 = arith.constant 0 : index
    %9 = vector.load %arg1[%c2, %c0_9] : memref<240x30xbf16, #tpu.memory_space<vmem>>, vector<238x30xbf16>
    %c2_10 = arith.constant 2 : index
    %c0_11 = arith.constant 0 : index
    %c0_12 = arith.constant 0 : index
    %10 = vector.load %arg2[%c2_10, %c0_11, %c0_12] : memref<3x30x256xbf16, #tpu.memory_space<vmem>>, vector<1x30x256xbf16>
    %11 = vector.shape_cast %10 : vector<1x30x256xbf16> to vector<30x256xbf16>
    %cst_13 = arith.constant dense<0.000000e+00> : vector<238x256xf32>
    %12 = tpu.matmul %9, %11, %cst_13 {dimension_numbers = #tpu.dot_dimension_numbers<[1], [0], [0], [1], [0, 0, 1, 1], [], []>} : vector<238x30xbf16>, vector<30x256xbf16>, vector<238x256xf32> -> vector<238x256xf32>
    %13 = arith.addf %8, %12 : vector<238x256xf32>
    %c0_14 = arith.constant 0 : index
    %c0_15 = arith.constant 0 : index
    %14 = vector.load %arg3[%c0_14, %c0_15] : memref<1x256xf32, #tpu.memory_space<vmem>>, vector<1x256xf32>
    %15 = vector.broadcast %14 : vector<1x256xf32> to vector<238x256xf32>
    %16 = arith.addf %13, %15 : vector<238x256xf32>
    %cst_16 = arith.constant 0.000000e+00 : f32
    %17 = vector.broadcast %cst_16 : f32 to vector<238x256xf32>
    %18 = arith.maximumf %16, %17 : vector<238x256xf32>
    %19 = vector.extract_strided_slice %18 {offsets = [0, 0], sizes = [238, 128], strides = [1, 1]} : vector<238x256xf32> to vector<238x128xf32>
    %20 = vector.extract_strided_slice %18 {offsets = [0, 128], sizes = [238, 128], strides = [1, 1]} : vector<238x256xf32> to vector<238x128xf32>
    %21 = arith.maximumf %19, %20 : vector<238x128xf32>
    %22 = arith.truncf %21 : vector<238x128xf32> to vector<238x128xbf16>
    %c0_17 = arith.constant 0 : index
    %c0_18 = arith.constant 0 : index
    %c0_19 = arith.constant 0 : index
    %23 = vector.load %arg4[%c0_17, %c0_18, %c0_19] : memref<2x128x238xbf16, #tpu.memory_space<vmem>>, vector<1x128x238xbf16>
    %24 = vector.shape_cast %23 : vector<1x128x238xbf16> to vector<128x238xbf16>
    %cst_20 = arith.constant dense<0.000000e+00> : vector<128x128xf32>
    %25 = tpu.matmul %24, %22, %cst_20 {dimension_numbers = #tpu.dot_dimension_numbers<[1], [0], [0], [1], [0, 0, 1, 1], [], []>} : vector<128x238xbf16>, vector<238x128xbf16>, vector<128x128xf32> -> vector<128x128xf32>
    %c1_21 = arith.constant 1 : index
    %c0_22 = arith.constant 0 : index
    %c0_23 = arith.constant 0 : index
    %26 = vector.load %arg4[%c1_21, %c0_22, %c0_23] : memref<2x128x238xbf16, #tpu.memory_space<vmem>>, vector<1x128x238xbf16>
    %27 = vector.shape_cast %26 : vector<1x128x238xbf16> to vector<128x238xbf16>
    %cst_24 = arith.constant dense<0.000000e+00> : vector<128x128xf32>
    %28 = tpu.matmul %27, %22, %cst_24 {dimension_numbers = #tpu.dot_dimension_numbers<[1], [0], [0], [1], [0, 0, 1, 1], [], []>} : vector<128x238xbf16>, vector<238x128xbf16>, vector<128x128xf32> -> vector<128x128xf32>
    %29 = arith.maximumf %25, %28 : vector<128x128xf32>
    %30 = arith.truncf %29 : vector<128x128xf32> to vector<128x128xbf16>
    %c0_25 = arith.constant 0 : index
    %c0_26 = arith.constant 0 : index
    %31 = vector.load %arg5[%c0_25, %c0_26] : memref<128x128xbf16, #tpu.memory_space<vmem>>, vector<128x128xbf16>
    tpu.vector_store %arg5[%c0_25, %c0_26], %30 {strides = array<i32>} : memref<128x128xbf16, #tpu.memory_space<vmem>>, vector<128x128xbf16>,
    return
  }
  func.func @transform_0(%arg0: i32) -> (i32, i32) {
    %c0_i32 = arith.constant 0 : i32
    %c0_i32_0 = arith.constant 0 : i32
    return %arg0, %c0_i32 : i32, i32
  }
  func.func @transform_1(%arg0: i32) -> (i32, i32, i32) {
    %c0_i32 = arith.constant 0 : i32
    %c0_i32_0 = arith.constant 0 : i32
    %c0_i32_1 = arith.constant 0 : i32
    %c0_i32_2 = arith.constant 0 : i32
    return %c0_i32, %c0_i32_0, %c0_i32_1 : i32, i32, i32
  }
  func.func @transform_2(%arg0: i32) -> (i32, i32) {
    %c0_i32 = arith.constant 0 : i32
    %c0_i32_0 = arith.constant 0 : i32
    %c0_i32_1 = arith.constant 0 : i32
    return %c0_i32, %c0_i32_0 : i32, i32
  }
  func.func @transform_3(%arg0: i32) -> (i32, i32, i32) {
    %c0_i32 = arith.constant 0 : i32
    %c0_i32_0 = arith.constant 0 : i32
    %c0_i32_1 = arith.constant 0 : i32
    %c0_i32_2 = arith.constant 0 : i32
    return %c0_i32, %c0_i32_0, %c0_i32_1 : i32, i32, i32
  }
  func.func @transform_4(%arg0: i32) -> (i32, i32) {
    %c0_i32 = arith.constant 0 : i32
    %c0_i32_0 = arith.constant 0 : i32
    return %arg0, %c0_i32 : i32, i32
  }
}

module attributes {stable_mosaic.version = 11 : i64} {
  func.func @_fc_kernel(%arg0: i32, %arg1: memref<8x896xbf16, #tpu.memory_space<vmem>>, %arg2: memref<896x10xbf16, #tpu.memory_space<vmem>>, %arg3: memref<1x10xf32, #tpu.memory_space<vmem>>, %arg4: memref<8x10xf32, #tpu.memory_space<vmem>>) attributes {dimension_semantics = [#tpu.dimension_semantics<parallel>], iteration_bounds = array<i64: 1>, scalar_prefetch = 0 : i64, scratch_operands = 0 : i64, tpu.core_type = #tpu.core_type<tc>, window_params = [{transform_indices = @transform_0, window_bounds = array<i64: 8, 896>}, {pipeline_mode = #tpu.pipeline_mode<synchronous>, transform_indices = @transform_1, window_bounds = array<i64: 896, 10>}, {pipeline_mode = #tpu.pipeline_mode<synchronous>, transform_indices = @transform_2, window_bounds = array<i64: 1, 10>}, {transform_indices = @transform_3, window_bounds = array<i64: 8, 10>}]} {
    %c0 = arith.constant 0 : index
    %c0_0 = arith.constant 0 : index
    %0 = vector.load %arg1[%c0, %c0_0] : memref<8x896xbf16, #tpu.memory_space<vmem>>, vector<8x896xbf16>
    %c0_1 = arith.constant 0 : index
    %c0_2 = arith.constant 0 : index
    %1 = vector.load %arg2[%c0_1, %c0_2] : memref<896x10xbf16, #tpu.memory_space<vmem>>, vector<896x10xbf16>
    %cst = arith.constant dense<0.000000e+00> : vector<8x10xf32>
    %2 = tpu.matmul %0, %1, %cst {dimension_numbers = #tpu.dot_dimension_numbers<[1], [0], [0], [1], [0, 0, 1, 1], [], []>} : vector<8x896xbf16>, vector<896x10xbf16>, vector<8x10xf32> -> vector<8x10xf32>
    %c0_3 = arith.constant 0 : index
    %c0_4 = arith.constant 0 : index
    %3 = vector.load %arg3[%c0_3, %c0_4] : memref<1x10xf32, #tpu.memory_space<vmem>>, vector<1x10xf32>
    %4 = vector.broadcast %3 : vector<1x10xf32> to vector<8x10xf32>
    %5 = arith.addf %2, %4 : vector<8x10xf32>
    %c0_5 = arith.constant 0 : index
    %c0_6 = arith.constant 0 : index
    %6 = vector.load %arg4[%c0_5, %c0_6] : memref<8x10xf32, #tpu.memory_space<vmem>>, vector<8x10xf32>
    tpu.vector_store %arg4[%c0_5, %c0_6], %5 {strides = array<i32>} : memref<8x10xf32, #tpu.memory_space<vmem>>, vector<8x10xf32>,
    return
  }
  func.func @transform_0(%arg0: i32) -> (i32, i32) {
    %c0_i32 = arith.constant 0 : i32
    %c0_i32_0 = arith.constant 0 : i32
    return %arg0, %c0_i32 : i32, i32
  }
  func.func @transform_1(%arg0: i32) -> (i32, i32) {
    %c0_i32 = arith.constant 0 : i32
    %c0_i32_0 = arith.constant 0 : i32
    %c0_i32_1 = arith.constant 0 : i32
    return %c0_i32, %c0_i32_0 : i32, i32
  }
  func.func @transform_2(%arg0: i32) -> (i32, i32) {
    %c0_i32 = arith.constant 0 : i32
    %c0_i32_0 = arith.constant 0 : i32
    %c0_i32_1 = arith.constant 0 : i32
    return %c0_i32, %c0_i32_0 : i32, i32
  }
  func.func @transform_3(%arg0: i32) -> (i32, i32) {
    %c0_i32 = arith.constant 0 : i32
    %c0_i32_0 = arith.constant 0 : i32
    return %arg0, %c0_i32 : i32, i32
  }
}

</mosaic_0001>

<llo_original>
// kernel: cnn_forward.5
$region0: #{cnn_forward.5}
  #allocation0 [shape = 'u32[]', space=smem, size = 0x4, offset = 0x4, fixed_abs, tag = 'smem constant byte address 0x4 - core index']
  #allocation1 [shape = 'u32[72,128]{1,0:T(1,128)}', space=vmem, size = 0x9000, scoped, tag = 'internal scratch']
  %s0 = inlined_call_operand.vmem [shape: bf16[8,896], index: 0, kind: input, shape index: {}]
  %s1 = inlined_call_operand.vmem [shape: bf16[896,10], index: 1, kind: input, shape index: {}]
  %s2 = inlined_call_operand.vmem [shape: f32[1,10], index: 2, kind: input, shape index: {}]
  %s3 = inlined_call_operand.vmem [shape: f32[8,10], index: 3, kind: output, shape index: {}]
  %s4 = sld [smem:[#allocation0]]
  $region22: #{cnn_forward.5} parent=0
    _
  %s6 = ssub.s32 1, %s4
  %s7 = scalar_select 0, %s6, %s4
  // Predicated region
  $region2: #{cnn_forward.5} parent=0 // pred_check
    _
  $region3: #{cnn_forward.5} parent=0 // pred_check_branch
    %9 = sbr.rel (0) target = $region5
  $region4: #{cnn_forward.5} parent=0 // pred_region
    _
  $region5: #{cnn_forward.5} parent=0 // pred_fallthru
    _
  // Predicated region
  $region6: #{cnn_forward.5} parent=0 // pred_check
    _
  $region7: #{cnn_forward.5} parent=0 // pred_check_branch
    %11 = sbr.rel (0) target = $region9
  $region8: #{cnn_forward.5} parent=0 // pred_region
    _
  $region9: #{cnn_forward.5} parent=0 // pred_fallthru
    _
  // Predicated region
  $region10: #{cnn_forward.5} parent=0 // pred_check
    _
  $region11: #{cnn_forward.5} parent=0 // pred_check_branch
    %13 = sbr.rel (0) target = $region13
  $region12: #{cnn_forward.5} parent=0 // pred_region
    _
  $region13: #{cnn_forward.5} parent=0 // pred_fallthru
    _
  %v14 = vld [vmem:[%s0] sm:$0xff]
  %v15 = vld [vmem:[%s0 + $0x8] sm:$0xff]
  %v16 = vld [vmem:[%s0 + $0x10] sm:$0xff]
  %v17 = vld [vmem:[%s0 + $0x18] sm:$0xf]
  %v18 = vld [vmem:[%s1] sm:$0xf]
  %v19 = vld [vmem:[%s1 + $0x4] sm:$0xf]
  %v20 = vld [vmem:[%s1 + $0x8] sm:$0xf]
  %v21 = vld [vmem:[%s1 + $0xc] sm:$0xf]
  %v22 = vld [vmem:[%s1 + $0x10] sm:$0xf]
  %v23 = vld [vmem:[%s1 + $0x14] sm:$0xf]
  %v24 = vld [vmem:[%s1 + $0x18] sm:$0xf]
  %v25 = vld [vmem:[%s1 + $0x1c] sm:$0xf]
  %v26 = vld [vmem:[%s1 + $0x20] sm:$0xf]
  %v27 = vld [vmem:[%s1 + $0x24] sm:$0xf]
  %v28 = vld [vmem:[%s1 + $0x28] sm:$0xf]
  %v29 = vld [vmem:[%s1 + $0x2c] sm:$0xf]
  %v30 = vld [vmem:[%s1 + $0x30] sm:$0xf]
  %v31 = vld [vmem:[%s1 + $0x34] sm:$0xf]
  %v32 = vld [vmem:[%s1 + $0x38] sm:$0xf]
  %v33 = vld [vmem:[%s1 + $0x3c] sm:$0xf]
  %v34 = vld [vmem:[%s1 + $0x40] sm:$0xf]
  %v35 = vld [vmem:[%s1 + $0x44] sm:$0xf]
  %v36 = vld [vmem:[%s1 + $0x48] sm:$0xf]
  %v37 = vld [vmem:[%s1 + $0x4c] sm:$0xf]
  %v38 = vld [vmem:[%s1 + $0x50] sm:$0xf]
  %v39 = vld [vmem:[%s1 + $0x54] sm:$0xf]
  %v40 = vld [vmem:[%s1 + $0x58] sm:$0xf]
  %v41 = vld [vmem:[%s1 + $0x5c] sm:$0xf]
  %v42 = vld [vmem:[%s1 + $0x60] sm:$0xf]
  %v43 = vld [vmem:[%s1 + $0x64] sm:$0xf]
  %v44 = vld [vmem:[%s1 + $0x68] sm:$0xf]
  %v45 = vld [vmem:[%s1 + $0x6c] sm:$0xf]
  %v46 = vld [vmem:[%s1 + $0x70] sm:$0xf]
  %v47 = vld [vmem:[%s1 + $0x74] sm:$0xf]
  %v48 = vld [vmem:[%s1 + $0x78] sm:$0xf]
  %v49 = vld [vmem:[%s1 + $0x7c] sm:$0xf]
  %v50 = vld [vmem:[%s1 + $0x80] sm:$0xf]
  %v51 = vld [vmem:[%s1 + $0x84] sm:$0xf]
  %v52 = vld [vmem:[%s1 + $0x88] sm:$0xf]
  %v53 = vld [vmem:[%s1 + $0x8c] sm:$0xf]
  %v54 = vld [vmem:[%s1 + $0x90] sm:$0xf]
  %v55 = vld [vmem:[%s1 + $0x94] sm:$0xf]
  %v56 = vld [vmem:[%s1 + $0x98] sm:$0xf]
  %v57 = vld [vmem:[%s1 + $0x9c] sm:$0xf]
  %v58 = vld [vmem:[%s1 + $0xa0] sm:$0xf]
  %v59 = vld [vmem:[%s1 + $0xa4] sm:$0xf]
  %v60 = vld [vmem:[%s1 + $0xa8] sm:$0xf]
  %v61 = vld [vmem:[%s1 + $0xac] sm:$0xf]
  %v62 = vld [vmem:[%s1 + $0xb0] sm:$0xf]
  %v63 = vld [vmem:[%s1 + $0xb4] sm:$0xf]
  %v64 = vld [vmem:[%s1 + $0xb8] sm:$0xf]
  %v65 = vld [vmem:[%s1 + $0xbc] sm:$0xf]
  %v66 = vld [vmem:[%s1 + $0xc0] sm:$0xf]
  %v67 = vld [vmem:[%s1 + $0xc4] sm:$0xf]
  %v68 = vld [vmem:[%s1 + $0xc8] sm:$0xf]
  %v69 = vld [vmem:[%s1 + $0xcc] sm:$0xf]
  %v70 = vld [vmem:[%s1 + $0xd0] sm:$0xf]
  %v71 = vld [vmem:[%s1 + $0xd4] sm:$0xf]
  %v72 = vld [vmem:[%s1 + $0xd8] sm:$0xf]
  %v73 = vld [vmem:[%s1 + $0xdc] sm:$0xf]
  %v74 = vld [vmem:[%s1 + $0xe0] sm:$0xf]
  %v75 = vld [vmem:[%s1 + $0xe4] sm:$0xf]
  %v76 = vld [vmem:[%s1 + $0xe8] sm:$0xf]
  %v77 = vld [vmem:[%s1 + $0xec] sm:$0xf]
  %v78 = vld [vmem:[%s1 + $0xf0] sm:$0xf]
  %v79 = vld [vmem:[%s1 + $0xf4] sm:$0xf]
  %v80 = vld [vmem:[%s1 + $0xf8] sm:$0xf]
  %v81 = vld [vmem:[%s1 + $0xfc] sm:$0xf]
  %v82 = vld [vmem:[%s1 + $0x100] sm:$0xf]
  %v83 = vld [vmem:[%s1 + $0x104] sm:$0xf]
  %v84 = vld [vmem:[%s1 + $0x108] sm:$0xf]
  %v85 = vld [vmem:[%s1 + $0x10c] sm:$0xf]
  %v86 = vld [vmem:[%s1 + $0x110] sm:$0xf]
  %v87 = vld [vmem:[%s1 + $0x114] sm:$0xf]
  %v88 = vld [vmem:[%s1 + $0x118] sm:$0xf]
  %v89 = vld [vmem:[%s1 + $0x11c] sm:$0xf]
  %v90 = vld [vmem:[%s1 + $0x120] sm:$0xf]
  %v91 = vld [vmem:[%s1 + $0x124] sm:$0xf]
  %v92 = vld [vmem:[%s1 + $0x128] sm:$0xf]
  %v93 = vld [vmem:[%s1 + $0x12c] sm:$0xf]
  %v94 = vld [vmem:[%s1 + $0x130] sm:$0xf]
  %v95 = vld [vmem:[%s1 + $0x134] sm:$0xf]
  %v96 = vld [vmem:[%s1 + $0x138] sm:$0xf]
  %v97 = vld [vmem:[%s1 + $0x13c] sm:$0xf]
  %v98 = vld [vmem:[%s1 + $0x140] sm:$0xf]
  %v99 = vld [vmem:[%s1 + $0x144] sm:$0xf]
  %v100 = vld [vmem:[%s1 + $0x148] sm:$0xf]
  %v101 = vld [vmem:[%s1 + $0x14c] sm:$0xf]
  %v102 = vld [vmem:[%s1 + $0x150] sm:$0xf]
  %v103 = vld [vmem:[%s1 + $0x154] sm:$0xf]
  %v104 = vld [vmem:[%s1 + $0x158] sm:$0xf]
  %v105 = vld [vmem:[%s1 + $0x15c] sm:$0xf]
  %v106 = vld [vmem:[%s1 + $0x160] sm:$0xf]
  %v107 = vld [vmem:[%s1 + $0x164] sm:$0xf]
  %v108 = vld [vmem:[%s1 + $0x168] sm:$0xf]
  %v109 = vld [vmem:[%s1 + $0x16c] sm:$0xf]
  %v110 = vld [vmem:[%s1 + $0x170] sm:$0xf]
  %v111 = vld [vmem:[%s1 + $0x174] sm:$0xf]
  %v112 = vld [vmem:[%s1 + $0x178] sm:$0xf]
  %v113 = vld [vmem:[%s1 + $0x17c] sm:$0xf]
  %v114 = vld [vmem:[%s1 + $0x180] sm:$0xf]
  %v115 = vld [vmem:[%s1 + $0x184] sm:$0xf]
  %v116 = vld [vmem:[%s1 + $0x188] sm:$0xf]
  %v117 = vld [vmem:[%s1 + $0x18c] sm:$0xf]
  %v118 = vld [vmem:[%s1 + $0x190] sm:$0xf]
  %v119 = vld [vmem:[%s1 + $0x194] sm:$0xf]
  %v120 = vld [vmem:[%s1 + $0x198] sm:$0xf]
  %v121 = vld [vmem:[%s1 + $0x19c] sm:$0xf]
  %v122 = vld [vmem:[%s1 + $0x1a0] sm:$0xf]
  %v123 = vld [vmem:[%s1 + $0x1a4] sm:$0xf]
  %v124 = vld [vmem:[%s1 + $0x1a8] sm:$0xf]
  %v125 = vld [vmem:[%s1 + $0x1ac] sm:$0xf]
  %v126 = vld [vmem:[%s1 + $0x1b0] sm:$0xf]
  %v127 = vld [vmem:[%s1 + $0x1b4] sm:$0xf]
  %v128 = vld [vmem:[%s1 + $0x1b8] sm:$0xf]
  %v129 = vld [vmem:[%s1 + $0x1bc] sm:$0xf]
  %v130 = vld [vmem:[%s2] sm:$0x1]
  %v132 = vperm.slane %v130, 0
  %v138 = vunpack.c.l.b16 %v14
  %v139 = vunpack.c.h.b16 %v14
  %v140 = vunpack.c.l.b16 %v15
  %v141 = vunpack.c.h.b16 %v15
  %v142 = vunpack.c.l.b16 %v16
  %v143 = vunpack.c.h.b16 %v16
  %v144 = vunpack.c.l.b16 %v17
  %v145 = vpack.c.b16 %v138, %v138
  %v146 = vpack.c.b16 %v139, %v139
  %v147 = vpack.c.b16 %v140, %v140
  %v148 = vpack.c.b16 %v141, %v141
  %v149 = vpack.c.b16 %v142, %v142
  %v150 = vpack.c.b16 %v143, %v143
  %v151 = vpack.c.b16 %v144, %v144
  %v271 = vunpack.c.l.b16 %v18
  %v272 = vunpack.c.l.b16 %v19
  %v273 = vunpack.c.l.b16 %v20
  %v274 = vunpack.c.l.b16 %v21
  %v275 = vunpack.c.l.b16 %v22
  %v276 = vunpack.c.l.b16 %v23
  %v277 = vunpack.c.l.b16 %v24
  %v278 = vunpack.c.l.b16 %v25
  %v279 = vunpack.c.l.b16 %v26
  %v280 = vunpack.c.l.b16 %v27
  %v281 = vunpack.c.l.b16 %v28
  %v282 = vunpack.c.l.b16 %v29
  %v283 = vunpack.c.l.b16 %v30
  %v284 = vunpack.c.l.b16 %v31
  %v285 = vunpack.c.l.b16 %v32
  %v286 = vunpack.c.l.b16 %v33
  %v287 = vunpack.c.l.b16 %v34
  %v288 = vunpack.c.l.b16 %v35
  %v289 = vunpack.c.l.b16 %v36
  %v290 = vunpack.c.l.b16 %v37
  %v291 = vunpack.c.l.b16 %v38
  %v292 = vunpack.c.l.b16 %v39
  %v293 = vunpack.c.l.b16 %v40
  %v294 = vunpack.c.l.b16 %v41
  %v295 = vunpack.c.l.b16 %v42
  %v296 = vunpack.c.l.b16 %v43
  %v297 = vunpack.c.l.b16 %v44
  %v298 = vunpack.c.l.b16 %v45
  %v299 = vunpack.c.l.b16 %v46
  %v300 = vunpack.c.l.b16 %v47
  %v301 = vunpack.c.l.b16 %v48
  %v302 = vunpack.c.l.b16 %v49
  %v303 = vunpack.c.l.b16 %v50
  %v304 = vunpack.c.l.b16 %v51
  %v305 = vunpack.c.l.b16 %v52
  %v306 = vunpack.c.l.b16 %v53
  %v307 = vunpack.c.l.b16 %v54
  %v308 = vunpack.c.l.b16 %v55
  %v309 = vunpack.c.l.b16 %v56
  %v310 = vunpack.c.l.b16 %v57
  %v311 = vunpack.c.l.b16 %v58
  %v312 = vunpack.c.l.b16 %v59
  %v313 = vunpack.c.l.b16 %v60
  %v314 = vunpack.c.l.b16 %v61
  %v315 = vunpack.c.l.b16 %v62
  %v316 = vunpack.c.l.b16 %v63
  %v317 = vunpack.c.l.b16 %v64
  %v318 = vunpack.c.l.b16 %v65
  %v319 = vunpack.c.l.b16 %v66
  %v320 = vunpack.c.l.b16 %v67
  %v321 = vunpack.c.l.b16 %v68
  %v322 = vunpack.c.l.b16 %v69
  %v323 = vunpack.c.l.b16 %v70
  %v324 = vunpack.c.l.b16 %v71
  %v325 = vunpack.c.l.b16 %v72
  %v326 = vunpack.c.l.b16 %v73
  %v327 = vunpack.c.l.b16 %v74
  %v328 = vunpack.c.l.b16 %v75
  %v329 = vunpack.c.l.b16 %v76
  %v330 = vunpack.c.l.b16 %v77
  %v331 = vunpack.c.l.b16 %v78
  %v332 = vunpack.c.l.b16 %v79
  %v333 = vunpack.c.l.b16 %v80
  %v334 = vunpack.c.l.b16 %v81
  %v335 = vunpack.c.l.b16 %v82
  %v336 = vunpack.c.l.b16 %v83
  %v337 = vunpack.c.l.b16 %v84
  %v338 = vunpack.c.l.b16 %v85
  %v339 = vunpack.c.l.b16 %v86
  %v340 = vunpack.c.l.b16 %v87
  %v341 = vunpack.c.l.b16 %v88
  %v342 = vunpack.c.l.b16 %v89
  %v343 = vunpack.c.l.b16 %v90
  %v344 = vunpack.c.l.b16 %v91
  %v345 = vunpack.c.l.b16 %v92
  %v346 = vunpack.c.l.b16 %v93
  %v347 = vunpack.c.l.b16 %v94
  %v348 = vunpack.c.l.b16 %v95
  %v349 = vunpack.c.l.b16 %v96
  %v350 = vunpack.c.l.b16 %v97
  %v351 = vunpack.c.l.b16 %v98
  %v352 = vunpack.c.l.b16 %v99
  %v353 = vunpack.c.l.b16 %v100
  %v354 = vunpack.c.l.b16 %v101
  %v355 = vunpack.c.l.b16 %v102
  %v356 = vunpack.c.l.b16 %v103
  %v357 = vunpack.c.l.b16 %v104
  %v358 = vunpack.c.l.b16 %v105
  %v359 = vunpack.c.l.b16 %v106
  %v360 = vunpack.c.l.b16 %v107
  %v361 = vunpack.c.l.b16 %v108
  %v362 = vunpack.c.l.b16 %v109
  %v363 = vunpack.c.l.b16 %v110
  %v364 = vunpack.c.l.b16 %v111
  %v365 = vunpack.c.l.b16 %v112
  %v366 = vunpack.c.l.b16 %v113
  %v367 = vunpack.c.l.b16 %v114
  %v368 = vunpack.c.l.b16 %v115
  %v369 = vunpack.c.l.b16 %v116
  %v370 = vunpack.c.l.b16 %v117
  %v371 = vunpack.c.l.b16 %v118
  %v372 = vunpack.c.l.b16 %v119
  %v373 = vunpack.c.l.b16 %v120
  %v374 = vunpack.c.l.b16 %v121
  %v375 = vunpack.c.l.b16 %v122
  %v376 = vunpack.c.l.b16 %v123
  %v377 = vunpack.c.l.b16 %v124
  %v378 = vunpack.c.l.b16 %v125
  %v379 = vunpack.c.l.b16 %v126
  %v380 = vunpack.c.l.b16 %v127
  %v381 = vunpack.c.l.b16 %v128
  %v382 = vunpack.c.l.b16 %v129
  %v383 = vpack.c.b16 %v272, %v271
  %v384 = vpack.c.b16 %v274, %v273
  %v385 = vpack.c.b16 %v276, %v275
  %v386 = vpack.c.b16 %v278, %v277
  %v387 = vpack.c.b16 %v280, %v279
  %v388 = vpack.c.b16 %v282, %v281
  %v389 = vpack.c.b16 %v284, %v283
  %v390 = vpack.c.b16 %v286, %v285
  %v391 = vpack.c.b16 %v288, %v287
  %v392 = vpack.c.b16 %v290, %v289
  %v393 = vpack.c.b16 %v292, %v291
  %v394 = vpack.c.b16 %v294, %v293
  %v395 = vpack.c.b16 %v296, %v295
  %v396 = vpack.c.b16 %v298, %v297
  %v397 = vpack.c.b16 %v300, %v299
  %v398 = vpack.c.b16 %v302, %v301
  %v399 = vpack.c.b16 %v304, %v303
  %v400 = vpack.c.b16 %v306, %v305
  %v401 = vpack.c.b16 %v308, %v307
  %v402 = vpack.c.b16 %v310, %v309
  %v403 = vpack.c.b16 %v312, %v311
  %v404 = vpack.c.b16 %v314, %v313
  %v405 = vpack.c.b16 %v316, %v315
  %v406 = vpack.c.b16 %v318, %v317
  %v407 = vpack.c.b16 %v320, %v319
  %v408 = vpack.c.b16 %v322, %v321
  %v409 = vpack.c.b16 %v324, %v323
  %v410 = vpack.c.b16 %v326, %v325
  %v411 = vpack.c.b16 %v328, %v327
  %v412 = vpack.c.b16 %v330, %v329
  %v413 = vpack.c.b16 %v332, %v331
  %v414 = vpack.c.b16 %v334, %v333
  %v415 = vpack.c.b16 %v336, %v335
  %v416 = vpack.c.b16 %v338, %v337
  %v417 = vpack.c.b16 %v340, %v339
  %v418 = vpack.c.b16 %v342, %v341
  %v419 = vpack.c.b16 %v344, %v343
  %v420 = vpack.c.b16 %v346, %v345
  %v421 = vpack.c.b16 %v348, %v347
  %v422 = vpack.c.b16 %v350, %v349
  %v423 = vpack.c.b16 %v352, %v351
  %v424 = vpack.c.b16 %v354, %v353
  %v425 = vpack.c.b16 %v356, %v355
  %v426 = vpack.c.b16 %v358, %v357
  %v427 = vpack.c.b16 %v360, %v359
  %v428 = vpack.c.b16 %v362, %v361
  %v429 = vpack.c.b16 %v364, %v363
  %v430 = vpack.c.b16 %v366, %v365
  %v431 = vpack.c.b16 %v368, %v367
  %v432 = vpack.c.b16 %v370, %v369
  %v433 = vpack.c.b16 %v372, %v371
  %v434 = vpack.c.b16 %v374, %v373
  %v435 = vpack.c.b16 %v376, %v375
  %v436 = vpack.c.b16 %v378, %v377
  %v437 = vpack.c.b16 %v380, %v379
  %v438 = vpack.c.b16 %v382, %v381
  %495 = vmatpush.bf16.msra.mxu0 %v390
  %496 = vmatpush.bf16.msra.mxu0 %v389
  %497 = vmatpush.bf16.msra.mxu0 %v388
  %498 = vmatpush.bf16.msra.mxu0 %v387
  %499 = vmatpush.bf16.msra.mxu0 %v386
  %500 = vmatpush.bf16.msra.mxu0 %v385
  %501 = vmatpush.bf16.msra.mxu0 %v384
  %502 = vmatpush.bf16.msra.mxu0 %v383
  %503 = vmatmul.bf16.gmra.mxu0 %v145
  %v504 = vpop.f32.mrf.mxu0
  %v505 = vadd.f32 %v132, %v504
  %v506 = vpop.f32.mrf.mxu0
  %507 = vdwg.mxu0
  %508 = vmatpush.bf16.msra.mxu0 %v398
  %509 = vmatpush.bf16.msra.mxu0 %v397
  %510 = vmatpush.bf16.msra.mxu0 %v396
  %511 = vmatpush.bf16.msra.mxu0 %v395
  %512 = vmatpush.bf16.msra.mxu0 %v394
  %513 = vmatpush.bf16.msra.mxu0 %v393
  %514 = vmatpush.bf16.msra.mxu0 %v392
  %515 = vmatpush.bf16.msra.mxu0 %v391
  %516 = vmatmul.bf16.gmra.mxu0 %v146
  %v517 = vpop.f32.mrf.mxu0
  %v518 = vadd.f32 %v505, %v517
  %v519 = vpop.f32.mrf.mxu0
  %520 = vdwg.mxu0
  %521 = vmatpush.bf16.msra.mxu0 %v406
  %522 = vmatpush.bf16.msra.mxu0 %v405
  %523 = vmatpush.bf16.msra.mxu0 %v404
  %524 = vmatpush.bf16.msra.mxu0 %v403
  %525 = vmatpush.bf16.msra.mxu0 %v402
  %526 = vmatpush.bf16.msra.mxu0 %v401
  %527 = vmatpush.bf16.msra.mxu0 %v400
  %528 = vmatpush.bf16.msra.mxu0 %v399
  %529 = vmatmul.bf16.gmra.mxu0 %v147
  %v530 = vpop.f32.mrf.mxu0
  %v531 = vadd.f32 %v518, %v530
  %v532 = vpop.f32.mrf.mxu0
  %533 = vdwg.mxu0
  %534 = vmatpush.bf16.msra.mxu0 %v414
  %535 = vmatpush.bf16.msra.mxu0 %v413
  %536 = vmatpush.bf16.msra.mxu0 %v412
  %537 = vmatpush.bf16.msra.mxu0 %v411
  %538 = vmatpush.bf16.msra.mxu0 %v410
  %539 = vmatpush.bf16.msra.mxu0 %v409
  %540 = vmatpush.bf16.msra.mxu0 %v408
  %541 = vmatpush.bf16.msra.mxu0 %v407
  %542 = vmatmul.bf16.gmra.mxu0 %v148
  %v543 = vpop.f32.mrf.mxu0
  %v544 = vadd.f32 %v531, %v543
  %v545 = vpop.f32.mrf.mxu0
  %546 = vdwg.mxu0
  %547 = vmatpush.bf16.msra.mxu0 %v422
  %548 = vmatpush.bf16.msra.mxu0 %v421
  %549 = vmatpush.bf16.msra.mxu0 %v420
  %550 = vmatpush.bf16.msra.mxu0 %v419
  %551 = vmatpush.bf16.msra.mxu0 %v418
  %552 = vmatpush.bf16.msra.mxu0 %v417
  %553 = vmatpush.bf16.msra.mxu0 %v416
  %554 = vmatpush.bf16.msra.mxu0 %v415
  %555 = vmatmul.bf16.gmra.mxu0 %v149
  %v556 = vpop.f32.mrf.mxu0
  %v557 = vadd.f32 %v544, %v556
  %v558 = vpop.f32.mrf.mxu0
  %559 = vdwg.mxu0
  %560 = vmatpush.bf16.msra.mxu0 %v430
  %561 = vmatpush.bf16.msra.mxu0 %v429
  %562 = vmatpush.bf16.msra.mxu0 %v428
  %563 = vmatpush.bf16.msra.mxu0 %v427
  %564 = vmatpush.bf16.msra.mxu0 %v426
  %565 = vmatpush.bf16.msra.mxu0 %v425
  %566 = vmatpush.bf16.msra.mxu0 %v424
  %567 = vmatpush.bf16.msra.mxu0 %v423
  %568 = vmatmul.bf16.gmra.mxu0 %v150
  %v569 = vpop.f32.mrf.mxu0
  %v570 = vadd.f32 %v557, %v569
  %v571 = vpop.f32.mrf.mxu0
  %572 = vdwg.mxu0
  %573 = vmatpush.bf16.msra.mxu0 %v438
  %574 = vmatpush.bf16.msra.mxu0 %v437
  %575 = vmatpush.bf16.msra.mxu0 %v436
  %576 = vmatpush.bf16.msra.mxu0 %v435
  %577 = vmatpush.bf16.msra.mxu0 %v434
  %578 = vmatpush.bf16.msra.mxu0 %v433
  %579 = vmatpush.bf16.msra.mxu0 %v432
  %580 = vmatpush.bf16.msra.mxu0 %v431
  %581 = vmatmul.bf16.gmra.mxu0 %v151
  %v582 = vpop.f32.mrf.mxu0
  %v583 = vadd.f32 %v570, %v582
  %v584 = vpop.f32.mrf.mxu0
  %585 = vdwg.mxu0
  %vm586 = vcmask 80896
  %587 = vst.msk [vmem:[%s3] sm:$0xff] %vm586, %v583
  // Predicated region
  $region14: #{cnn_forward.5} parent=0 // pred_check
    _
  $region15: #{cnn_forward.5} parent=0 // pred_check_branch
    %589 = sbr.rel (0) target = $region17
  $region16: #{cnn_forward.5} parent=0 // pred_region
    _
  $region17: #{cnn_forward.5} parent=0 // pred_fallthru
    _
  // Predicated region
  $region18: #{cnn_forward.5} parent=0 // pred_check
    _
  $region19: #{cnn_forward.5} parent=0 // pred_check_branch
    %591 = sbr.rel (0) target = $region21
  $region20: #{cnn_forward.5} parent=0 // pred_region
    _
  $region21: #{cnn_forward.5} parent=0 // pred_fallthru
    _

// kernel: cnn_forward.4
$region0: #{cnn_forward.4}
  #allocation0 [shape = 'u32[]', space=smem, size = 0x4, offset = 0x4, fixed_abs, tag = 'smem constant byte address 0x4 - core index']
  #allocation1 [shape = 'u32[72,128]{1,0:T(1,128)}', space=vmem, size = 0x9000, scoped, tag = 'internal scratch']
  %s0 = inlined_call_operand.vmem [shape: bf16[128,128], index: 0, kind: input, shape index: {}]
  %s1 = inlined_call_operand.vmem [shape: bf16[3,128,256], index: 1, kind: input, shape index: {}]
  %s2 = inlined_call_operand.vmem [shape: f32[1,256], index: 2, kind: input, shape index: {}]
  %s3 = inlined_call_operand.vmem [shape: bf16[2,56,126], index: 3, kind: input, shape index: {}]
  %s4 = inlined_call_operand.vmem [shape: bf16[56,128], index: 4, kind: output, shape index: {}]
  %s5 = sld [smem:[#allocation0]]
  $region26: #{cnn_forward.4} parent=0
    _
  %s7 = ssub.s32 1, %s5
  %s8 = scalar_select 0, %s7, %s5
  // Predicated region
  $region2: #{cnn_forward.4} parent=0 // pred_check
    _
  $region3: #{cnn_forward.4} parent=0 // pred_check_branch
    %10 = sbr.rel (0) target = $region5
  $region4: #{cnn_forward.4} parent=0 // pred_region
    _
  $region5: #{cnn_forward.4} parent=0 // pred_fallthru
    _
  // Predicated region
  $region6: #{cnn_forward.4} parent=0 // pred_check
    _
  $region7: #{cnn_forward.4} parent=0 // pred_check_branch
    %12 = sbr.rel (0) target = $region9
  $region8: #{cnn_forward.4} parent=0 // pred_region
    _
  $region9: #{cnn_forward.4} parent=0 // pred_fallthru
    _
  // Predicated region
  $region10: #{cnn_forward.4} parent=0 // pred_check
    _
  $region11: #{cnn_forward.4} parent=0 // pred_check_branch
    %14 = sbr.rel (0) target = $region13
  $region12: #{cnn_forward.4} parent=0 // pred_region
    _
  $region13: #{cnn_forward.4} parent=0 // pred_fallthru
    _
  // Predicated region
  $region14: #{cnn_forward.4} parent=0 // pred_check
    _
  $region15: #{cnn_forward.4} parent=0 // pred_check_branch
    %16 = sbr.rel (0) target = $region17
  $region16: #{cnn_forward.4} parent=0 // pred_region
    _
  $region17: #{cnn_forward.4} parent=0 // pred_fallthru
    _
  %v17 = vld [vmem:[%s0] sm:$0xf]
  %v18 = vld [vmem:[%s0 + $0x4] sm:$0xf]
  %v19 = vld [vmem:[%s0 + $0x8] sm:$0xf]
  %v20 = vld [vmem:[%s0 + $0xc] sm:$0xf]
  %v21 = vld [vmem:[%s0 + $0x10] sm:$0xf]
  %v22 = vld [vmem:[%s0 + $0x14] sm:$0xf]
  %v23 = vld [vmem:[%s0 + $0x18] sm:$0xf]
  %v24 = vld [vmem:[%s0 + $0x1c] sm:$0xf]
  %v25 = vld [vmem:[%s0 + $0x20] sm:$0xf]
  %v26 = vld [vmem:[%s0 + $0x24] sm:$0xf]
  %v27 = vld [vmem:[%s0 + $0x28] sm:$0xf]
  %v28 = vld [vmem:[%s0 + $0x2c] sm:$0xf]
  %v29 = vld [vmem:[%s0 + $0x30] sm:$0xf]
  %v30 = vld [vmem:[%s0 + $0x34] sm:$0xf]
  %v31 = vld [vmem:[%s0 + $0x38] sm:$0xf]
  %v32 = vld [vmem:[%s0 + $0x3c] sm:$0x7]
  %v33 = vld [vmem:[%s1] sm:$0xff]
  %v34 = vld [vmem:[%s1 + $0x8] sm:$0xff]
  %v35 = vld [vmem:[%s1 + $0x10] sm:$0xff]
  %v36 = vld [vmem:[%s1 + $0x18] sm:$0xff]
  %v37 = vld [vmem:[%s1 + $0x20] sm:$0xff]
  %v38 = vld [vmem:[%s1 + $0x28] sm:$0xff]
  %v39 = vld [vmem:[%s1 + $0x30] sm:$0xff]
  %v40 = vld [vmem:[%s1 + $0x38] sm:$0xff]
  %v41 = vld [vmem:[%s1 + $0x40] sm:$0xff]
  %v42 = vld [vmem:[%s1 + $0x48] sm:$0xff]
  %v43 = vld [vmem:[%s1 + $0x50] sm:$0xff]
  %v44 = vld [vmem:[%s1 + $0x58] sm:$0xff]
  %v45 = vld [vmem:[%s1 + $0x60] sm:$0xff]
  %v46 = vld [vmem:[%s1 + $0x68] sm:$0xff]
  %v47 = vld [vmem:[%s1 + $0x70] sm:$0xff]
  %v48 = vld [vmem:[%s1 + $0x78] sm:$0xff]
  %v49 = vld [vmem:[%s0 + $0x3c] sm:$0xf]
  %s50 = scalar_lea.vmem %s1, 128
  %v51 = vld [vmem:[%s50] sm:$0xff]
  %v52 = vld [vmem:[%s50 + $0x8] sm:$0xff]
  %v53 = vld [vmem:[%s50 + $0x10] sm:$0xff]
  %v54 = vld [vmem:[%s50 + $0x18] sm:$0xff]
  %v55 = vld [vmem:[%s50 + $0x20] sm:$0xff]
  %v56 = vld [vmem:[%s50 + $0x28] sm:$0xff]
  %v57 = vld [vmem:[%s50 + $0x30] sm:$0xff]
  %v58 = vld [vmem:[%s50 + $0x38] sm:$0xff]
  %v59 = vld [vmem:[%s50 + $0x40] sm:$0xff]
  %v60 = vld [vmem:[%s50 + $0x48] sm:$0xff]
  %v61 = vld [vmem:[%s50 + $0x50] sm:$0xff]
  %v62 = vld [vmem:[%s50 + $0x58] sm:$0xff]
  %v63 = vld [vmem:[%s50 + $0x60] sm:$0xff]
  %v64 = vld [vmem:[%s50 + $0x68] sm:$0xff]
  %v65 = vld [vmem:[%s50 + $0x70] sm:$0xff]
  %v66 = vld [vmem:[%s50 + $0x78] sm:$0xff]
  %v83 = vunpack.c.l.b16 %v17
  %v84 = vunpack.c.l.b16 %v18
  %v85 = vunpack.c.l.b16 %v19
  %v86 = vunpack.c.l.b16 %v20
  %v87 = vunpack.c.l.b16 %v21
  %v88 = vunpack.c.l.b16 %v22
  %v89 = vunpack.c.l.b16 %v23
  %v90 = vunpack.c.l.b16 %v24
  %v91 = vunpack.c.l.b16 %v25
  %v92 = vunpack.c.l.b16 %v26
  %v93 = vunpack.c.l.b16 %v27
  %v94 = vunpack.c.l.b16 %v28
  %v95 = vunpack.c.l.b16 %v29
  %v96 = vunpack.c.l.b16 %v30
  %v97 = vunpack.c.l.b16 %v31
  %v98 = vunpack.c.l.b16 %v49
  %v99 = vpack.c.b16 %v84, %v83
  %v100 = vpack.c.b16 %v86, %v85
  %v101 = vpack.c.b16 %v88, %v87
  %v102 = vpack.c.b16 %v90, %v89
  %v103 = vpack.c.b16 %v92, %v91
  %v104 = vpack.c.b16 %v94, %v93
  %v105 = vpack.c.b16 %v96, %v95
  %v106 = vpack.c.b16 %v98, %v97
  %vm107 = vsmask.f32 7424
  %v109 = vshrl.u32 %v99, 16
  %v111 = vshll.u32 %v99, 16
  %v113 = vrot.slane %v111, 1
  %v114 = vor.u32 %v109, %v113
  %v116 = vshll.u32 %v100, 16
  %v118 = vrot.slane %v116, 1
  %v119 = vsel %vm107, %v114, %v118
  %v120 = vshrl.u32 %v100, 16
  %v122 = vor.u32 %v120, %v118
  %v124 = vshll.u32 %v101, 16
  %v126 = vrot.slane %v124, 1
  %v127 = vsel %vm107, %v122, %v126
  %v128 = vshrl.u32 %v101, 16
  %v130 = vor.u32 %v128, %v126
  %v132 = vshll.u32 %v102, 16
  %v134 = vrot.slane %v132, 1
  %v135 = vsel %vm107, %v130, %v134
  %v136 = vshrl.u32 %v102, 16
  %v138 = vor.u32 %v136, %v134
  %v140 = vshll.u32 %v103, 16
  %v142 = vrot.slane %v140, 1
  %v143 = vsel %vm107, %v138, %v142
  %v144 = vshrl.u32 %v103, 16
  %v146 = vor.u32 %v144, %v142
  %v148 = vshll.u32 %v104, 16
  %v150 = vrot.slane %v148, 1
  %v151 = vsel %vm107, %v146, %v150
  %v152 = vshrl.u32 %v104, 16
  %v154 = vor.u32 %v152, %v150
  %v156 = vshll.u32 %v105, 16
  %v158 = vrot.slane %v156, 1
  %v159 = vsel %vm107, %v154, %v158
  %v160 = vshrl.u32 %v105, 16
  %v162 = vor.u32 %v160, %v158
  %v164 = vshll.u32 %v106, 16
  %v166 = vrot.slane %v164, 1
  %v167 = vsel %vm107, %v162, %v166
  %v168 = vshrl.u32 %v106, 16
  %v170 = vor.u32 %v168, %v166
  %v195 = vunpack.c.l.b16 %v51
  %v196 = vunpack.c.h.b16 %v51
  %v197 = vunpack.c.l.b16 %v52
  %v198 = vunpack.c.h.b16 %v52
  %v199 = vunpack.c.l.b16 %v53
  %v200 = vunpack.c.h.b16 %v53
  %v201 = vunpack.c.l.b16 %v54
  %v202 = vunpack.c.h.b16 %v54
  %v203 = vunpack.c.l.b16 %v55
  %v204 = vunpack.c.h.b16 %v55
  %v205 = vunpack.c.l.b16 %v56
  %v206 = vunpack.c.h.b16 %v56
  %v207 = vunpack.c.l.b16 %v57
  %v208 = vunpack.c.h.b16 %v57
  %v209 = vunpack.c.l.b16 %v58
  %v210 = vunpack.c.h.b16 %v58
  %v211 = vunpack.c.l.b16 %v59
  %v212 = vunpack.c.h.b16 %v59
  %v213 = vunpack.c.l.b16 %v60
  %v214 = vunpack.c.h.b16 %v60
  %v215 = vunpack.c.l.b16 %v61
  %v216 = vunpack.c.h.b16 %v61
  %v217 = vunpack.c.l.b16 %v62
  %v218 = vunpack.c.h.b16 %v62
  %v219 = vunpack.c.l.b16 %v63
  %v220 = vunpack.c.h.b16 %v63
  %v221 = vunpack.c.l.b16 %v64
  %v222 = vunpack.c.h.b16 %v64
  %v223 = vunpack.c.l.b16 %v65
  %v224 = vunpack.c.h.b16 %v65
  %v225 = vunpack.c.l.b16 %v66
  %v226 = vunpack.c.h.b16 %v66
  %v227 = vpack.c.b16 %v197, %v195
  %v228 = vpack.c.b16 %v198, %v196
  %v229 = vpack.c.b16 %v201, %v199
  %v230 = vpack.c.b16 %v202, %v200
  %v231 = vpack.c.b16 %v205, %v203
  %v232 = vpack.c.b16 %v206, %v204
  %v233 = vpack.c.b16 %v209, %v207
  %v234 = vpack.c.b16 %v210, %v208
  %v235 = vpack.c.b16 %v213, %v211
  %v236 = vpack.c.b16 %v214, %v212
  %v237 = vpack.c.b16 %v217, %v215
  %v238 = vpack.c.b16 %v218, %v216
  %v239 = vpack.c.b16 %v221, %v219
  %v240 = vpack.c.b16 %v222, %v220
  %v241 = vpack.c.b16 %v225, %v223
  %v242 = vpack.c.b16 %v226, %v224
  %259 = vmatpush.bf16.msra.mxu0 %v241
  %260 = vmatpush.bf16.msra.mxu0 %v239
  %261 = vmatpush.bf16.msra.mxu0 %v237
  %262 = vmatpush.bf16.msra.mxu0 %v235
  %263 = vmatpush.bf16.msra.mxu0 %v233
  %264 = vmatpush.bf16.msra.mxu0 %v231
  %265 = vmatpush.bf16.msra.mxu0 %v229
  %266 = vmatpush.bf16.msra.mxu0 %v227
  %267 = vmatmul.bf16.gmra.mxu0 %v119
  %v268 = vpop.f32.mrf.mxu0
  %v269 = vadd.f32 0.0, %v268
  %v270 = vpop.f32.mrf.mxu0
  %v271 = vadd.f32 0.0, %v270
  %272 = vmatmul.bf16.gmra.mxu0 %v127
  %v273 = vpop.f32.mrf.mxu0
  %v274 = vadd.f32 0.0, %v273
  %v275 = vpop.f32.mrf.mxu0
  %v276 = vadd.f32 0.0, %v275
  %277 = vmatmul.bf16.gmra.mxu0 %v135
  %v278 = vpop.f32.mrf.mxu0
  %v279 = vadd.f32 0.0, %v278
  %v280 = vpop.f32.mrf.mxu0
  %v281 = vadd.f32 0.0, %v280
  %282 = vmatmul.bf16.gmra.mxu0 %v143
  %v283 = vpop.f32.mrf.mxu0
  %v284 = vadd.f32 0.0, %v283
  %v285 = vpop.f32.mrf.mxu0
  %v286 = vadd.f32 0.0, %v285
  %287 = vmatmul.bf16.gmra.mxu0 %v151
  %v288 = vpop.f32.mrf.mxu0
  %v289 = vadd.f32 0.0, %v288
  %v290 = vpop.f32.mrf.mxu0
  %v291 = vadd.f32 0.0, %v290
  %292 = vmatmul.bf16.gmra.mxu0 %v159
  %v293 = vpop.f32.mrf.mxu0
  %v294 = vadd.f32 0.0, %v293
  %v295 = vpop.f32.mrf.mxu0
  %v296 = vadd.f32 0.0, %v295
  %297 = vmatmul.bf16.gmra.mxu0 %v167
  %v298 = vpop.f32.mrf.mxu0
  %v299 = vadd.f32 0.0, %v298
  %v300 = vpop.f32.mrf.mxu0
  %v301 = vadd.f32 0.0, %v300
  %302 = vmatmul.bf16.gmra.mxu0 %v170
  %v303 = vpop.f32.mrf.mxu0
  %v304 = vadd.f32 0.0, %v303
  %v305 = vpop.f32.mrf.mxu0
  %v306 = vadd.f32 0.0, %v305
  %307 = vdwg.mxu0
  %308 = vmatpush.bf16.msra.mxu0 %v242
  %309 = vmatpush.bf16.msra.mxu0 %v240
  %310 = vmatpush.bf16.msra.mxu0 %v238
  %311 = vmatpush.bf16.msra.mxu0 %v236
  %312 = vmatpush.bf16.msra.mxu0 %v234
  %313 = vmatpush.bf16.msra.mxu0 %v232
  %314 = vmatpush.bf16.msra.mxu0 %v230
  %315 = vmatpush.bf16.msra.mxu0 %v228
  %316 = vmatmul.bf16.gmra.mxu0 %v119
  %v317 = vpop.f32.mrf.mxu0
  %v318 = vadd.f32 0.0, %v317
  %v319 = vpop.f32.mrf.mxu0
  %v320 = vadd.f32 0.0, %v319
  %321 = vmatmul.bf16.gmra.mxu0 %v127
  %v322 = vpop.f32.mrf.mxu0
  %v323 = vadd.f32 0.0, %v322
  %v324 = vpop.f32.mrf.mxu0
  %v325 = vadd.f32 0.0, %v324
  %326 = vmatmul.bf16.gmra.mxu0 %v135
  %v327 = vpop.f32.mrf.mxu0
  %v328 = vadd.f32 0.0, %v327
  %v329 = vpop.f32.mrf.mxu0
  %v330 = vadd.f32 0.0, %v329
  %331 = vmatmul.bf16.gmra.mxu0 %v143
  %v332 = vpop.f32.mrf.mxu0
  %v333 = vadd.f32 0.0, %v332
  %v334 = vpop.f32.mrf.mxu0
  %v335 = vadd.f32 0.0, %v334
  %336 = vmatmul.bf16.gmra.mxu0 %v151
  %v337 = vpop.f32.mrf.mxu0
  %v338 = vadd.f32 0.0, %v337
  %v339 = vpop.f32.mrf.mxu0
  %v340 = vadd.f32 0.0, %v339
  %341 = vmatmul.bf16.gmra.mxu0 %v159
  %v342 = vpop.f32.mrf.mxu0
  %v343 = vadd.f32 0.0, %v342
  %v344 = vpop.f32.mrf.mxu0
  %v345 = vadd.f32 0.0, %v344
  %346 = vmatmul.bf16.gmra.mxu0 %v167
  %v347 = vpop.f32.mrf.mxu0
  %v348 = vadd.f32 0.0, %v347
  %v349 = vpop.f32.mrf.mxu0
  %v350 = vadd.f32 0.0, %v349
  %351 = vmatmul.bf16.gmra.mxu0 %v170
  %v352 = vpop.f32.mrf.mxu0
  %v353 = vadd.f32 0.0, %v352
  %v354 = vpop.f32.mrf.mxu0
  %v355 = vadd.f32 0.0, %v354
  %356 = vdwg.mxu0
  %v358 = vunpack.c.l.b16 %v32
  %v359 = vpack.c.b16 %v358, %v97
  %v384 = vunpack.c.l.b16 %v33
  %v385 = vunpack.c.h.b16 %v33
  %v386 = vunpack.c.l.b16 %v34
  %v387 = vunpack.c.h.b16 %v34
  %v388 = vunpack.c.l.b16 %v35
  %v389 = vunpack.c.h.b16 %v35
  %v390 = vunpack.c.l.b16 %v36
  %v391 = vunpack.c.h.b16 %v36
  %v392 = vunpack.c.l.b16 %v37
  %v393 = vunpack.c.h.b16 %v37
  %v394 = vunpack.c.l.b16 %v38
  %v395 = vunpack.c.h.b16 %v38
  %v396 = vunpack.c.l.b16 %v39
  %v397 = vunpack.c.h.b16 %v39
  %v398 = vunpack.c.l.b16 %v40
  %v399 = vunpack.c.h.b16 %v40
  %v400 = vunpack.c.l.b16 %v41
  %v401 = vunpack.c.h.b16 %v41
  %v402 = vunpack.c.l.b16 %v42
  %v403 = vunpack.c.h.b16 %v42
  %v404 = vunpack.c.l.b16 %v43
  %v405 = vunpack.c.h.b16 %v43
  %v406 = vunpack.c.l.b16 %v44
  %v407 = vunpack.c.h.b16 %v44
  %v408 = vunpack.c.l.b16 %v45
  %v409 = vunpack.c.h.b16 %v45
  %v410 = vunpack.c.l.b16 %v46
  %v411 = vunpack.c.h.b16 %v46
  %v412 = vunpack.c.l.b16 %v47
  %v413 = vunpack.c.h.b16 %v47
  %v414 = vunpack.c.l.b16 %v48
  %v415 = vunpack.c.h.b16 %v48
  %v416 = vpack.c.b16 %v386, %v384
  %v417 = vpack.c.b16 %v387, %v385
  %v418 = vpack.c.b16 %v390, %v388
  %v419 = vpack.c.b16 %v391, %v389
  %v420 = vpack.c.b16 %v394, %v392
  %v421 = vpack.c.b16 %v395, %v393
  %v422 = vpack.c.b16 %v398, %v396
  %v423 = vpack.c.b16 %v399, %v397
  %v424 = vpack.c.b16 %v402, %v400
  %v425 = vpack.c.b16 %v403, %v401
  %v426 = vpack.c.b16 %v406, %v404
  %v427 = vpack.c.b16 %v407, %v405
  %v428 = vpack.c.b16 %v410, %v408
  %v429 = vpack.c.b16 %v411, %v409
  %v430 = vpack.c.b16 %v414, %v412
  %v431 = vpack.c.b16 %v415, %v413
  %448 = vmatpush.bf16.msra.mxu0 %v430
  %449 = vmatpush.bf16.msra.mxu0 %v428
  %450 = vmatpush.bf16.msra.mxu0 %v426
  %451 = vmatpush.bf16.msra.mxu0 %v424
  %452 = vmatpush.bf16.msra.mxu0 %v422
  %453 = vmatpush.bf16.msra.mxu0 %v420
  %454 = vmatpush.bf16.msra.mxu0 %v418
  %455 = vmatpush.bf16.msra.mxu0 %v416
  %456 = vmatmul.bf16.gmra.mxu0 %v99
  %v457 = vpop.f32.mrf.mxu0
  %v458 = vadd.f32 %v269, %v457
  %v459 = vpop.f32.mrf.mxu0
  %v460 = vadd.f32 %v271, %v459
  %461 = vmatmul.bf16.gmra.mxu0 %v100
  %v462 = vpop.f32.mrf.mxu0
  %v463 = vadd.f32 %v274, %v462
  %v464 = vpop.f32.mrf.mxu0
  %v465 = vadd.f32 %v276, %v464
  %466 = vmatmul.bf16.gmra.mxu0 %v101
  %v467 = vpop.f32.mrf.mxu0
  %v468 = vadd.f32 %v279, %v467
  %v469 = vpop.f32.mrf.mxu0
  %v470 = vadd.f32 %v281, %v469
  %471 = vmatmul.bf16.gmra.mxu0 %v102
  %v472 = vpop.f32.mrf.mxu0
  %v473 = vadd.f32 %v284, %v472
  %v474 = vpop.f32.mrf.mxu0
  %v475 = vadd.f32 %v286, %v474
  %476 = vmatmul.bf16.gmra.mxu0 %v103
  %v477 = vpop.f32.mrf.mxu0
  %v478 = vadd.f32 %v289, %v477
  %v479 = vpop.f32.mrf.mxu0
  %v480 = vadd.f32 %v291, %v479
  %481 = vmatmul.bf16.gmra.mxu0 %v104
  %v482 = vpop.f32.mrf.mxu0
  %v483 = vadd.f32 %v294, %v482
  %v484 = vpop.f32.mrf.mxu0
  %v485 = vadd.f32 %v296, %v484
  %486 = vmatmul.bf16.gmra.mxu0 %v105
  %v487 = vpop.f32.mrf.mxu0
  %v488 = vadd.f32 %v299, %v487
  %v489 = vpop.f32.mrf.mxu0
  %v490 = vadd.f32 %v301, %v489
  %491 = vmatmul.bf16.gmra.mxu0 %v359
  %v492 = vpop.f32.mrf.mxu0
  %v493 = vadd.f32 %v304, %v492
  %v494 = vpop.f32.mrf.mxu0
  %v495 = vadd.f32 %v306, %v494
  %496 = vdwg.mxu0
  %497 = vmatpush.bf16.msra.mxu0 %v431
  %498 = vmatpush.bf16.msra.mxu0 %v429
  %499 = vmatpush.bf16.msra.mxu0 %v427
  %500 = vmatpush.bf16.msra.mxu0 %v425
  %501 = vmatpush.bf16.msra.mxu0 %v423
  %502 = vmatpush.bf16.msra.mxu0 %v421
  %503 = vmatpush.bf16.msra.mxu0 %v419
  %504 = vmatpush.bf16.msra.mxu0 %v417
  %505 = vmatmul.bf16.gmra.mxu0 %v99
  %v506 = vpop.f32.mrf.mxu0
  %v507 = vadd.f32 %v318, %v506
  %v508 = vpop.f32.mrf.mxu0
  %v509 = vadd.f32 %v320, %v508
  %510 = vmatmul.bf16.gmra.mxu0 %v100
  %v511 = vpop.f32.mrf.mxu0
  %v512 = vadd.f32 %v323, %v511
  %v513 = vpop.f32.mrf.mxu0
  %v514 = vadd.f32 %v325, %v513
  %515 = vmatmul.bf16.gmra.mxu0 %v101
  %v516 = vpop.f32.mrf.mxu0
  %v517 = vadd.f32 %v328, %v516
  %v518 = vpop.f32.mrf.mxu0
  %v519 = vadd.f32 %v330, %v518
  %520 = vmatmul.bf16.gmra.mxu0 %v102
  %v521 = vpop.f32.mrf.mxu0
  %v522 = vadd.f32 %v333, %v521
  %v523 = vpop.f32.mrf.mxu0
  %v524 = vadd.f32 %v335, %v523
  %525 = vmatmul.bf16.gmra.mxu0 %v103
  %v526 = vpop.f32.mrf.mxu0
  %v527 = vadd.f32 %v338, %v526
  %v528 = vpop.f32.mrf.mxu0
  %v529 = vadd.f32 %v340, %v528
  %530 = vmatmul.bf16.gmra.mxu0 %v104
  %v531 = vpop.f32.mrf.mxu0
  %v532 = vadd.f32 %v343, %v531
  %v533 = vpop.f32.mrf.mxu0
  %v534 = vadd.f32 %v345, %v533
  %535 = vmatmul.bf16.gmra.mxu0 %v105
  %v536 = vpop.f32.mrf.mxu0
  %v537 = vadd.f32 %v348, %v536
  %v538 = vpop.f32.mrf.mxu0
  %v539 = vadd.f32 %v350, %v538
  %540 = vmatmul.bf16.gmra.mxu0 %v359
  %v541 = vpop.f32.mrf.mxu0
  %v542 = vadd.f32 %v353, %v541
  %v543 = vpop.f32.mrf.mxu0
  %v544 = vadd.f32 %v355, %v543
  %545 = vdwg.mxu0
  %v546 = vld [vmem:[%s0] sm:$0xe]
  %s547 = scalar_lea.vmem %s1, 256
  %v548 = vld [vmem:[%s547] sm:$0xff]
  %v549 = vld [vmem:[%s547 + $0x8] sm:$0xff]
  %v550 = vld [vmem:[%s547 + $0x10] sm:$0xff]
  %v551 = vld [vmem:[%s547 + $0x18] sm:$0xff]
  %v552 = vld [vmem:[%s547 + $0x20] sm:$0xff]
  %v553 = vld [vmem:[%s547 + $0x28] sm:$0xff]
  %v554 = vld [vmem:[%s547 + $0x30] sm:$0xff]
  %v555 = vld [vmem:[%s547 + $0x38] sm:$0xff]
  %v556 = vld [vmem:[%s547 + $0x40] sm:$0xff]
  %v557 = vld [vmem:[%s547 + $0x48] sm:$0xff]
  %v558 = vld [vmem:[%s547 + $0x50] sm:$0xff]
  %v559 = vld [vmem:[%s547 + $0x58] sm:$0xff]
  %v560 = vld [vmem:[%s547 + $0x60] sm:$0xff]
  %v561 = vld [vmem:[%s547 + $0x68] sm:$0xff]
  %v562 = vld [vmem:[%s547 + $0x70] sm:$0xff]
  %v563 = vld [vmem:[%s547 + $0x78] sm:$0xff]
  %v565 = vunpack.c.l.b16 %v546
  %v566 = vpack.c.b16 %v84, %v565
  %vm567 = vcmask 1046528
  %v568 = vrot.slane %v566, 1
  %v569 = vrot.slane %v100, 1
  %v570 = vsel %vm567, %v568, %v569
  %v571 = vrot.slane %v101, 1
  %v572 = vsel %vm567, %v569, %v571
  %v573 = vrot.slane %v102, 1
  %v574 = vsel %vm567, %v571, %v573
  %v575 = vrot.slane %v103, 1
  %v576 = vsel %vm567, %v573, %v575
  %v577 = vrot.slane %v104, 1
  %v578 = vsel %vm567, %v575, %v577
  %v579 = vrot.slane %v105, 1
  %v580 = vsel %vm567, %v577, %v579
  %v581 = vrot.slane %v106, 1
  %v582 = vsel %vm567, %v579, %v581
  %v607 = vunpack.c.l.b16 %v548
  %v608 = vunpack.c.h.b16 %v548
  %v609 = vunpack.c.l.b16 %v549
  %v610 = vunpack.c.h.b16 %v549
  %v611 = vunpack.c.l.b16 %v550
  %v612 = vunpack.c.h.b16 %v550
  %v613 = vunpack.c.l.b16 %v551
  %v614 = vunpack.c.h.b16 %v551
  %v615 = vunpack.c.l.b16 %v552
  %v616 = vunpack.c.h.b16 %v552
  %v617 = vunpack.c.l.b16 %v553
  %v618 = vunpack.c.h.b16 %v553
  %v619 = vunpack.c.l.b16 %v554
  %v620 = vunpack.c.h.b16 %v554
  %v621 = vunpack.c.l.b16 %v555
  %v622 = vunpack.c.h.b16 %v555
  %v623 = vunpack.c.l.b16 %v556
  %v624 = vunpack.c.h.b16 %v556
  %v625 = vunpack.c.l.b16 %v557
  %v626 = vunpack.c.h.b16 %v557
  %v627 = vunpack.c.l.b16 %v558
  %v628 = vunpack.c.h.b16 %v558
  %v629 = vunpack.c.l.b16 %v559
  %v630 = vunpack.c.h.b16 %v559
  %v631 = vunpack.c.l.b16 %v560
  %v632 = vunpack.c.h.b16 %v560
  %v633 = vunpack.c.l.b16 %v561
  %v634 = vunpack.c.h.b16 %v561
  %v635 = vunpack.c.l.b16 %v562
  %v636 = vunpack.c.h.b16 %v562
  %v637 = vunpack.c.l.b16 %v563
  %v638 = vunpack.c.h.b16 %v563
  %v639 = vpack.c.b16 %v609, %v607
  %v640 = vpack.c.b16 %v610, %v608
  %v641 = vpack.c.b16 %v613, %v611
  %v642 = vpack.c.b16 %v614, %v612
  %v643 = vpack.c.b16 %v617, %v615
  %v644 = vpack.c.b16 %v618, %v616
  %v645 = vpack.c.b16 %v621, %v619
  %v646 = vpack.c.b16 %v622, %v620
  %v647 = vpack.c.b16 %v625, %v623
  %v648 = vpack.c.b16 %v626, %v624
  %v649 = vpack.c.b16 %v629, %v627
  %v650 = vpack.c.b16 %v630, %v628
  %v651 = vpack.c.b16 %v633, %v631
  %v652 = vpack.c.b16 %v634, %v632
  %v653 = vpack.c.b16 %v637, %v635
  %v654 = vpack.c.b16 %v638, %v636
  %671 = vmatpush.bf16.msra.mxu0 %v653
  %672 = vmatpush.bf16.msra.mxu0 %v651
  %673 = vmatpush.bf16.msra.mxu0 %v649
  %674 = vmatpush.bf16.msra.mxu0 %v647
  %675 = vmatpush.bf16.msra.mxu0 %v645
  %676 = vmatpush.bf16.msra.mxu0 %v643
  %677 = vmatpush.bf16.msra.mxu0 %v641
  %678 = vmatpush.bf16.msra.mxu0 %v639
  %679 = vmatmul.bf16.gmra.mxu0 %v570
  %v680 = vpop.f32.mrf.mxu0
  %v681 = vadd.f32 0.0, %v680
  %v682 = vpop.f32.mrf.mxu0
  %v683 = vadd.f32 0.0, %v682
  %684 = vmatmul.bf16.gmra.mxu0 %v572
  %v685 = vpop.f32.mrf.mxu0
  %v686 = vadd.f32 0.0, %v685
  %v687 = vpop.f32.mrf.mxu0
  %v688 = vadd.f32 0.0, %v687
  %689 = vmatmul.bf16.gmra.mxu0 %v574
  %v690 = vpop.f32.mrf.mxu0
  %v691 = vadd.f32 0.0, %v690
  %v692 = vpop.f32.mrf.mxu0
  %v693 = vadd.f32 0.0, %v692
  %694 = vmatmul.bf16.gmra.mxu0 %v576
  %v695 = vpop.f32.mrf.mxu0
  %v696 = vadd.f32 0.0, %v695
  %v697 = vpop.f32.mrf.mxu0
  %v698 = vadd.f32 0.0, %v697
  %699 = vmatmul.bf16.gmra.mxu0 %v578
  %v700 = vpop.f32.mrf.mxu0
  %v701 = vadd.f32 0.0, %v700
  %v702 = vpop.f32.mrf.mxu0
  %v703 = vadd.f32 0.0, %v702
  %704 = vmatmul.bf16.gmra.mxu0 %v580
  %v705 = vpop.f32.mrf.mxu0
  %v706 = vadd.f32 0.0, %v705
  %v707 = vpop.f32.mrf.mxu0
  %v708 = vadd.f32 0.0, %v707
  %709 = vmatmul.bf16.gmra.mxu0 %v582
  %v710 = vpop.f32.mrf.mxu0
  %v711 = vadd.f32 0.0, %v710
  %v712 = vpop.f32.mrf.mxu0
  %v713 = vadd.f32 0.0, %v712
  %714 = vmatmul.bf16.gmra.mxu0 %v581
  %v715 = vpop.f32.mrf.mxu0
  %v716 = vadd.f32 0.0, %v715
  %v717 = vpop.f32.mrf.mxu0
  %v718 = vadd.f32 0.0, %v717
  %719 = vdwg.mxu0
  %720 = vmatpush.bf16.msra.mxu0 %v654
  %721 = vmatpush.bf16.msra.mxu0 %v652
  %722 = vmatpush.bf16.msra.mxu0 %v650
  %723 = vmatpush.bf16.msra.mxu0 %v648
  %724 = vmatpush.bf16.msra.mxu0 %v646
  %725 = vmatpush.bf16.msra.mxu0 %v644
  %726 = vmatpush.bf16.msra.mxu0 %v642
  %727 = vmatpush.bf16.msra.mxu0 %v640
  %728 = vmatmul.bf16.gmra.mxu0 %v570
  %v729 = vpop.f32.mrf.mxu0
  %v730 = vadd.f32 0.0, %v729
  %v731 = vpop.f32.mrf.mxu0
  %v732 = vadd.f32 0.0, %v731
  %733 = vmatmul.bf16.gmra.mxu0 %v572
  %v734 = vpop.f32.mrf.mxu0
  %v735 = vadd.f32 0.0, %v734
  %v736 = vpop.f32.mrf.mxu0
  %v737 = vadd.f32 0.0, %v736
  %738 = vmatmul.bf16.gmra.mxu0 %v574
  %v739 = vpop.f32.mrf.mxu0
  %v740 = vadd.f32 0.0, %v739
  %v741 = vpop.f32.mrf.mxu0
  %v742 = vadd.f32 0.0, %v741
  %743 = vmatmul.bf16.gmra.mxu0 %v576
  %v744 = vpop.f32.mrf.mxu0
  %v745 = vadd.f32 0.0, %v744
  %v746 = vpop.f32.mrf.mxu0
  %v747 = vadd.f32 0.0, %v746
  %748 = vmatmul.bf16.gmra.mxu0 %v578
  %v749 = vpop.f32.mrf.mxu0
  %v750 = vadd.f32 0.0, %v749
  %v751 = vpop.f32.mrf.mxu0
  %v752 = vadd.f32 0.0, %v751
  %753 = vmatmul.bf16.gmra.mxu0 %v580
  %v754 = vpop.f32.mrf.mxu0
  %v755 = vadd.f32 0.0, %v754
  %v756 = vpop.f32.mrf.mxu0
  %v757 = vadd.f32 0.0, %v756
  %758 = vmatmul.bf16.gmra.mxu0 %v582
  %v759 = vpop.f32.mrf.mxu0
  %v760 = vadd.f32 0.0, %v759
  %v761 = vpop.f32.mrf.mxu0
  %v762 = vadd.f32 0.0, %v761
  %763 = vmatmul.bf16.gmra.mxu0 %v581
  %v764 = vpop.f32.mrf.mxu0
  %v765 = vadd.f32 0.0, %v764
  %v766 = vpop.f32.mrf.mxu0
  %v767 = vadd.f32 0.0, %v766
  %768 = vdwg.mxu0
  %v769 = vadd.f32 %v458, %v681
  %v770 = vadd.f32 %v507, %v730
  %v771 = vadd.f32 %v460, %v683
  %v772 = vadd.f32 %v509, %v732
  %v773 = vadd.f32 %v463, %v686
  %v774 = vadd.f32 %v512, %v735
  %v775 = vadd.f32 %v465, %v688
  %v776 = vadd.f32 %v514, %v737
  %v777 = vadd.f32 %v468, %v691
  %v778 = vadd.f32 %v517, %v740
  %v779 = vadd.f32 %v470, %v693
  %v780 = vadd.f32 %v519, %v742
  %v781 = vadd.f32 %v473, %v696
  %v782 = vadd.f32 %v522, %v745
  %v783 = vadd.f32 %v475, %v698
  %v784 = vadd.f32 %v524, %v747
  %v785 = vadd.f32 %v478, %v701
  %v786 = vadd.f32 %v527, %v750
  %v787 = vadd.f32 %v480, %v703
  %v788 = vadd.f32 %v529, %v752
  %v789 = vadd.f32 %v483, %v706
  %v790 = vadd.f32 %v532, %v755
  %v791 = vadd.f32 %v485, %v708
  %v792 = vadd.f32 %v534, %v757
  %v793 = vadd.f32 %v488, %v711
  %v794 = vadd.f32 %v537, %v760
  %v795 = vadd.f32 %v490, %v713
  %v796 = vadd.f32 %v539, %v762
  %v797 = vadd.f32 %v493, %v716
  %v798 = vadd.f32 %v542, %v765
  %v799 = vadd.f32 %v495, %v718
  %v800 = vadd.f32 %v544, %v767
  %v801 = vld [vmem:[%s2] sm:$0x3]
  %v803 = vperm.slane %v801, 0
  %v804 = vperm.slane %v801, 1
  %v807 = vadd.f32 %v769, %v803
  %v808 = vadd.f32 %v770, %v804
  %v809 = vadd.f32 %v771, %v803
  %v810 = vadd.f32 %v772, %v804
  %v811 = vadd.f32 %v773, %v803
  %v812 = vadd.f32 %v774, %v804
  %v813 = vadd.f32 %v775, %v803
  %v814 = vadd.f32 %v776, %v804
  %v815 = vadd.f32 %v777, %v803
  %v816 = vadd.f32 %v778, %v804
  %v817 = vadd.f32 %v779, %v803
  %v818 = vadd.f32 %v780, %v804
  %v819 = vadd.f32 %v781, %v803
  %v820 = vadd.f32 %v782, %v804
  %v821 = vadd.f32 %v783, %v803
  %v822 = vadd.f32 %v784, %v804
  %v823 = vadd.f32 %v785, %v803
  %v824 = vadd.f32 %v786, %v804
  %v825 = vadd.f32 %v787, %v803
  %v826 = vadd.f32 %v788, %v804
  %v827 = vadd.f32 %v789, %v803
  %v828 = vadd.f32 %v790, %v804
  %v829 = vadd.f32 %v791, %v803
  %v830 = vadd.f32 %v792, %v804
  %v831 = vadd.f32 %v793, %v803
  %v832 = vadd.f32 %v794, %v804
  %v833 = vadd.f32 %v795, %v803
  %v834 = vadd.f32 %v796, %v804
  %v835 = vadd.f32 %v797, %v803
  %v836 = vadd.f32 %v798, %v804
  %v837 = vadd.f32 %v799, %v803
  %v838 = vadd.f32 %v800, %v804
  %v839 = vmax.f32 %v807, 0.0
  %v840 = vmax.f32 %v808, 0.0
  %v841 = vmax.f32 %v809, 0.0
  %v842 = vmax.f32 %v810, 0.0
  %v843 = vmax.f32 %v811, 0.0
  %v844 = vmax.f32 %v812, 0.0
  %v845 = vmax.f32 %v813, 0.0
  %v846 = vmax.f32 %v814, 0.0
  %v847 = vmax.f32 %v815, 0.0
  %v848 = vmax.f32 %v816, 0.0
  %v849 = vmax.f32 %v817, 0.0
  %v850 = vmax.f32 %v818, 0.0
  %v851 = vmax.f32 %v819, 0.0
  %v852 = vmax.f32 %v820, 0.0
  %v853 = vmax.f32 %v821, 0.0
  %v854 = vmax.f32 %v822, 0.0
  %v855 = vmax.f32 %v823, 0.0
  %v856 = vmax.f32 %v824, 0.0
  %v857 = vmax.f32 %v825, 0.0
  %v858 = vmax.f32 %v826, 0.0
  %v859 = vmax.f32 %v827, 0.0
  %v860 = vmax.f32 %v828, 0.0
  %v861 = vmax.f32 %v829, 0.0
  %v862 = vmax.f32 %v830, 0.0
  %v863 = vmax.f32 %v831, 0.0
  %v864 = vmax.f32 %v832, 0.0
  %v865 = vmax.f32 %v833, 0.0
  %v866 = vmax.f32 %v834, 0.0
  %v867 = vmax.f32 %v835, 0.0
  %v868 = vmax.f32 %v836, 0.0
  %v869 = vmax.f32 %v837, 0.0
  %v870 = vmax.f32 %v838, 0.0
  %v871 = vmax.f32 %v839, %v840
  %v872 = vmax.f32 %v841, %v842
  %v873 = vmax.f32 %v843, %v844
  %v874 = vmax.f32 %v845, %v846
  %v875 = vmax.f32 %v847, %v848
  %v876 = vmax.f32 %v849, %v850
  %v877 = vmax.f32 %v851, %v852
  %v878 = vmax.f32 %v853, %v854
  %v879 = vmax.f32 %v855, %v856
  %v880 = vmax.f32 %v857, %v858
  %v881 = vmax.f32 %v859, %v860
  %v882 = vmax.f32 %v861, %v862
  %v883 = vmax.f32 %v863, %v864
  %v884 = vmax.f32 %v865, %v866
  %v885 = vmax.f32 %v867, %v868
  %v886 = vmax.f32 %v869, %v870
  %v887 = vpack.c.bf16 %v872, %v871
  %v888 = vpack.c.bf16 %v874, %v873
  %v889 = vpack.c.bf16 %v876, %v875
  %v890 = vpack.c.bf16 %v878, %v877
  %v891 = vpack.c.bf16 %v880, %v879
  %v892 = vpack.c.bf16 %v882, %v881
  %v893 = vpack.c.bf16 %v884, %v883
  %v894 = vpack.c.bf16 %v886, %v885
  %v895 = vld [vmem:[%s3] sm:$0xf]
  %v896 = vld [vmem:[%s3 + $0x4] sm:$0xf]
  %v897 = vld [vmem:[%s3 + $0x8] sm:$0xf]
  %v898 = vld [vmem:[%s3 + $0xc] sm:$0xf]
  %v899 = vld [vmem:[%s3 + $0x10] sm:$0xf]
  %v900 = vld [vmem:[%s3 + $0x14] sm:$0xf]
  %v901 = vld [vmem:[%s3 + $0x18] sm:$0xf]
  %v909 = vunpack.c.l.b16 %v895
  %v910 = vunpack.c.l.b16 %v896
  %v911 = vunpack.c.l.b16 %v897
  %v912 = vunpack.c.l.b16 %v898
  %v913 = vunpack.c.l.b16 %v899
  %v914 = vunpack.c.l.b16 %v900
  %v915 = vunpack.c.l.b16 %v901
  %v916 = vpack.c.b16 %v910, %v909
  %v917 = vpack.c.b16 %v912, %v911
  %v918 = vpack.c.b16 %v914, %v913
  %v919 = vpack.c.b16 %v915, %v915
  %vm920 = vcmask 1031168
  %v922 = vsel %vm920, %v916, 0
  %v925 = vsel %vm920, %v917, 0
  %v928 = vsel %vm920, %v918, 0
  %v931 = vsel %vm920, %v919, 0
  %vm933 = vcmask 1046528
  %v935 = vsel %vm933, %v894, 0
  %937 = vmatpush.bf16.msra.mxu0 %v935
  %938 = vmatpush.bf16.msra.mxu0 %v893
  %939 = vmatpush.bf16.msra.mxu0 %v892
  %940 = vmatpush.bf16.msra.mxu0 %v891
  %941 = vmatpush.bf16.msra.mxu0 %v890
  %942 = vmatpush.bf16.msra.mxu0 %v889
  %943 = vmatpush.bf16.msra.mxu0 %v888
  %944 = vmatpush.bf16.msra.mxu0 %v887
  %945 = vmatmul.bf16.gmra.mxu0 %v922
  %v946 = vpop.f32.mrf.mxu0
  %v947 = vadd.f32 0.0, %v946
  %v948 = vpop.f32.mrf.mxu0
  %v949 = vadd.f32 0.0, %v948
  %950 = vmatmul.bf16.gmra.mxu0 %v925
  %v951 = vpop.f32.mrf.mxu0
  %v952 = vadd.f32 0.0, %v951
  %v953 = vpop.f32.mrf.mxu0
  %v954 = vadd.f32 0.0, %v953
  %955 = vmatmul.bf16.gmra.mxu0 %v928
  %v956 = vpop.f32.mrf.mxu0
  %v957 = vadd.f32 0.0, %v956
  %v958 = vpop.f32.mrf.mxu0
  %v959 = vadd.f32 0.0, %v958
  %960 = vmatmul.bf16.gmra.mxu0 %v931
  %v961 = vpop.f32.mrf.mxu0
  %v962 = vadd.f32 0.0, %v961
  %v963 = vpop.f32.mrf.mxu0
  %964 = vdwg.mxu0
  %s965 = scalar_lea.vmem %s3, 28
  %v966 = vld [vmem:[%s965] sm:$0xf]
  %v967 = vld [vmem:[%s965 + $0x4] sm:$0xf]
  %v968 = vld [vmem:[%s965 + $0x8] sm:$0xf]
  %v969 = vld [vmem:[%s965 + $0xc] sm:$0xf]
  %v970 = vld [vmem:[%s965 + $0x10] sm:$0xf]
  %v971 = vld [vmem:[%s965 + $0x14] sm:$0xf]
  %v972 = vld [vmem:[%s965 + $0x18] sm:$0xf]
  %v980 = vunpack.c.l.b16 %v966
  %v981 = vunpack.c.l.b16 %v967
  %v982 = vunpack.c.l.b16 %v968
  %v983 = vunpack.c.l.b16 %v969
  %v984 = vunpack.c.l.b16 %v970
  %v985 = vunpack.c.l.b16 %v971
  %v986 = vunpack.c.l.b16 %v972
  %v987 = vpack.c.b16 %v981, %v980
  %v988 = vpack.c.b16 %v983, %v982
  %v989 = vpack.c.b16 %v985, %v984
  %v990 = vpack.c.b16 %v986, %v986
  %v992 = vsel %vm920, %v987, 0
  %v995 = vsel %vm920, %v988, 0
  %v998 = vsel %vm920, %v989, 0
  %v1001 = vsel %vm920, %v990, 0
  %1003 = vmatpush.bf16.msra.mxu0 %v935
  %1004 = vmatpush.bf16.msra.mxu0 %v893
  %1005 = vmatpush.bf16.msra.mxu0 %v892
  %1006 = vmatpush.bf16.msra.mxu0 %v891
  %1007 = vmatpush.bf16.msra.mxu0 %v890
  %1008 = vmatpush.bf16.msra.mxu0 %v889
  %1009 = vmatpush.bf16.msra.mxu0 %v888
  %1010 = vmatpush.bf16.msra.mxu0 %v887
  %1011 = vmatmul.bf16.gmra.mxu0 %v992
  %v1012 = vpop.f32.mrf.mxu0
  %v1013 = vadd.f32 0.0, %v1012
  %v1014 = vpop.f32.mrf.mxu0
  %v1015 = vadd.f32 0.0, %v1014
  %1016 = vmatmul.bf16.gmra.mxu0 %v995
  %v1017 = vpop.f32.mrf.mxu0
  %v1018 = vadd.f32 0.0, %v1017
  %v1019 = vpop.f32.mrf.mxu0
  %v1020 = vadd.f32 0.0, %v1019
  %1021 = vmatmul.bf16.gmra.mxu0 %v998
  %v1022 = vpop.f32.mrf.mxu0
  %v1023 = vadd.f32 0.0, %v1022
  %v1024 = vpop.f32.mrf.mxu0
  %v1025 = vadd.f32 0.0, %v1024
  %1026 = vmatmul.bf16.gmra.mxu0 %v1001
  %v1027 = vpop.f32.mrf.mxu0
  %v1028 = vadd.f32 0.0, %v1027
  %v1029 = vpop.f32.mrf.mxu0
  %1030 = vdwg.mxu0
  %v1031 = vmax.f32 %v947, %v1013
  %v1032 = vmax.f32 %v949, %v1015
  %v1033 = vmax.f32 %v952, %v1018
  %v1034 = vmax.f32 %v954, %v1020
  %v1035 = vmax.f32 %v957, %v1023
  %v1036 = vmax.f32 %v959, %v1025
  %v1037 = vmax.f32 %v962, %v1028
  %v1038 = vpack.c.bf16 %v1031, %v1031
  %v1039 = vpack.c.bf16 %v1032, %v1032
  %v1040 = vpack.c.bf16 %v1033, %v1033
  %v1041 = vpack.c.bf16 %v1034, %v1034
  %v1042 = vpack.c.bf16 %v1035, %v1035
  %v1043 = vpack.c.bf16 %v1036, %v1036
  %v1044 = vpack.c.bf16 %v1037, %v1037
  %1045 = vst [vmem:[%s4] sm:$0xf] %v1038
  %1046 = vst [vmem:[%s4 + $0x4] sm:$0xf] %v1039
  %1047 = vst [vmem:[%s4 + $0x8] sm:$0xf] %v1040
  %1048 = vst [vmem:[%s4 + $0xc] sm:$0xf] %v1041
  %1049 = vst [vmem:[%s4 + $0x10] sm:$0xf] %v1042
  %1050 = vst [vmem:[%s4 + $0x14] sm:$0xf] %v1043
  %1051 = vst [vmem:[%s4 + $0x18] sm:$0xf] %v1044
  // Predicated region
  $region18: #{cnn_forward.4} parent=0 // pred_check
    _
  $region19: #{cnn_forward.4} parent=0 // pred_check_branch
    %1053 = sbr.rel (0) target = $region21
  $region20: #{cnn_forward.4} parent=0 // pred_region
    _
  $region21: #{cnn_forward.4} parent=0 // pred_fallthru
    _
  // Predicated region
  $region22: #{cnn_forward.4} parent=0 // pred_check
    _
  $region23: #{cnn_forward.4} parent=0 // pred_check_branch
    %1055 = sbr.rel (0) target = $region25
  $region24: #{cnn_forward.4} parent=0 // pred_region
    _
  $region25: #{cnn_forward.4} parent=0 // pred_fallthru
    _

// kernel: cnn_forward.3
$region0: #{cnn_forward.3}
  #allocation0 [shape = 'u32[]', space=smem, size = 0x4, offset = 0x4, fixed_abs, tag = 'smem constant byte address 0x4 - core index']
  #allocation1 [shape = 'u32[72,128]{1,0:T(1,128)}', space=vmem, size = 0x9000, scoped, tag = 'internal scratch']
  %s0 = inlined_call_operand.vmem [shape: bf16[240,30], index: 0, kind: input, shape index: {}]
  %s1 = inlined_call_operand.vmem [shape: bf16[3,30,256], index: 1, kind: input, shape index: {}]
  %s2 = inlined_call_operand.vmem [shape: f32[1,256], index: 2, kind: input, shape index: {}]
  %s3 = inlined_call_operand.vmem [shape: bf16[2,128,238], index: 3, kind: input, shape index: {}]
  %s4 = inlined_call_operand.vmem [shape: bf16[128,128], index: 4, kind: output, shape index: {}]
  %s5 = sld [smem:[#allocation0]]
  $region26: #{cnn_forward.3} parent=0
    _
  %s7 = ssub.s32 1, %s5
  %s8 = scalar_select 0, %s7, %s5
  // Predicated region
  $region2: #{cnn_forward.3} parent=0 // pred_check
    _
  $region3: #{cnn_forward.3} parent=0 // pred_check_branch
    %10 = sbr.rel (0) target = $region5
  $region4: #{cnn_forward.3} parent=0 // pred_region
    _
  $region5: #{cnn_forward.3} parent=0 // pred_fallthru
    _
  // Predicated region
  $region6: #{cnn_forward.3} parent=0 // pred_check
    _
  $region7: #{cnn_forward.3} parent=0 // pred_check_branch
    %12 = sbr.rel (0) target = $region9
  $region8: #{cnn_forward.3} parent=0 // pred_region
    _
  $region9: #{cnn_forward.3} parent=0 // pred_fallthru
    _
  // Predicated region
  $region10: #{cnn_forward.3} parent=0 // pred_check
    _
  $region11: #{cnn_forward.3} parent=0 // pred_check_branch
    %14 = sbr.rel (0) target = $region13
  $region12: #{cnn_forward.3} parent=0 // pred_region
    _
  $region13: #{cnn_forward.3} parent=0 // pred_fallthru
    _
  // Predicated region
  $region14: #{cnn_forward.3} parent=0 // pred_check
    _
  $region15: #{cnn_forward.3} parent=0 // pred_check_branch
    %16 = sbr.rel (0) target = $region17
  $region16: #{cnn_forward.3} parent=0 // pred_region
    _
  $region17: #{cnn_forward.3} parent=0 // pred_fallthru
    _
  %v18 = vld [vmem:[%s0] sm:$0xf]
  %v19 = vld [vmem:[%s0 + $0x4] sm:$0xf]
  %v20 = vld [vmem:[%s0 + $0x8] sm:$0xf]
  %v21 = vld [vmem:[%s0 + $0xc] sm:$0xf]
  %v22 = vld [vmem:[%s0 + $0x10] sm:$0xf]
  %v23 = vld [vmem:[%s0 + $0x14] sm:$0xf]
  %v24 = vld [vmem:[%s0 + $0x18] sm:$0xf]
  %v25 = vld [vmem:[%s0 + $0x1c] sm:$0xf]
  %v26 = vld [vmem:[%s0 + $0x20] sm:$0xf]
  %v27 = vld [vmem:[%s0 + $0x24] sm:$0xf]
  %v28 = vld [vmem:[%s0 + $0x28] sm:$0xf]
  %v29 = vld [vmem:[%s0 + $0x2c] sm:$0xf]
  %v30 = vld [vmem:[%s0 + $0x30] sm:$0xf]
  %v31 = vld [vmem:[%s0 + $0x34] sm:$0xf]
  %v32 = vld [vmem:[%s0 + $0x38] sm:$0xf]
  %v33 = vld [vmem:[%s0 + $0x3c] sm:$0xf]
  %v34 = vld [vmem:[%s0 + $0x40] sm:$0xf]
  %v35 = vld [vmem:[%s0 + $0x44] sm:$0xf]
  %v36 = vld [vmem:[%s0 + $0x48] sm:$0xf]
  %v37 = vld [vmem:[%s0 + $0x4c] sm:$0xf]
  %v38 = vld [vmem:[%s0 + $0x50] sm:$0xf]
  %v39 = vld [vmem:[%s0 + $0x54] sm:$0xf]
  %v40 = vld [vmem:[%s0 + $0x58] sm:$0xf]
  %v41 = vld [vmem:[%s0 + $0x5c] sm:$0xf]
  %v42 = vld [vmem:[%s0 + $0x60] sm:$0xf]
  %v43 = vld [vmem:[%s0 + $0x64] sm:$0xf]
  %v44 = vld [vmem:[%s0 + $0x68] sm:$0xf]
  %v45 = vld [vmem:[%s0 + $0x6c] sm:$0xf]
  %v46 = vld [vmem:[%s0 + $0x70] sm:$0xf]
  %v47 = vld [vmem:[%s0 + $0x74] sm:$0x7]
  %v48 = vld [vmem:[%s1] sm:$0xff]
  %v49 = vld [vmem:[%s1 + $0x8] sm:$0xff]
  %v50 = vld [vmem:[%s1 + $0x10] sm:$0xff]
  %v51 = vld [vmem:[%s1 + $0x18] sm:$0x77]
  %v52 = vld [vmem:[%s0 + $0x74] sm:$0xf]
  %s53 = scalar_lea.vmem %s1, 32
  %v54 = vld [vmem:[%s53] sm:$0xff]
  %v55 = vld [vmem:[%s53 + $0x8] sm:$0xff]
  %v56 = vld [vmem:[%s53 + $0x10] sm:$0xff]
  %v57 = vld [vmem:[%s53 + $0x18] sm:$0x77]
  %v88 = vunpack.c.l.b16 %v18
  %v89 = vunpack.c.l.b16 %v19
  %v90 = vunpack.c.l.b16 %v20
  %v91 = vunpack.c.l.b16 %v21
  %v92 = vunpack.c.l.b16 %v22
  %v93 = vunpack.c.l.b16 %v23
  %v94 = vunpack.c.l.b16 %v24
  %v95 = vunpack.c.l.b16 %v25
  %v96 = vunpack.c.l.b16 %v26
  %v97 = vunpack.c.l.b16 %v27
  %v98 = vunpack.c.l.b16 %v28
  %v99 = vunpack.c.l.b16 %v29
  %v100 = vunpack.c.l.b16 %v30
  %v101 = vunpack.c.l.b16 %v31
  %v102 = vunpack.c.l.b16 %v32
  %v103 = vunpack.c.l.b16 %v33
  %v104 = vunpack.c.l.b16 %v34
  %v105 = vunpack.c.l.b16 %v35
  %v106 = vunpack.c.l.b16 %v36
  %v107 = vunpack.c.l.b16 %v37
  %v108 = vunpack.c.l.b16 %v38
  %v109 = vunpack.c.l.b16 %v39
  %v110 = vunpack.c.l.b16 %v40
  %v111 = vunpack.c.l.b16 %v41
  %v112 = vunpack.c.l.b16 %v42
  %v113 = vunpack.c.l.b16 %v43
  %v114 = vunpack.c.l.b16 %v44
  %v115 = vunpack.c.l.b16 %v45
  %v116 = vunpack.c.l.b16 %v46
  %v117 = vunpack.c.l.b16 %v52
  %v118 = vpack.c.b16 %v89, %v88
  %v119 = vpack.c.b16 %v91, %v90
  %v120 = vpack.c.b16 %v93, %v92
  %v121 = vpack.c.b16 %v95, %v94
  %v122 = vpack.c.b16 %v97, %v96
  %v123 = vpack.c.b16 %v99, %v98
  %v124 = vpack.c.b16 %v101, %v100
  %v125 = vpack.c.b16 %v103, %v102
  %v126 = vpack.c.b16 %v105, %v104
  %v127 = vpack.c.b16 %v107, %v106
  %v128 = vpack.c.b16 %v109, %v108
  %v129 = vpack.c.b16 %v111, %v110
  %v130 = vpack.c.b16 %v113, %v112
  %v131 = vpack.c.b16 %v115, %v114
  %v132 = vpack.c.b16 %v117, %v116
  %vm133 = vsmask.f32 7424
  %v135 = vshrl.u32 %v118, 16
  %v137 = vshll.u32 %v118, 16
  %v139 = vrot.slane %v137, 1
  %v140 = vor.u32 %v135, %v139
  %v142 = vshll.u32 %v119, 16
  %v144 = vrot.slane %v142, 1
  %v145 = vsel %vm133, %v140, %v144
  %v146 = vshrl.u32 %v119, 16
  %v148 = vor.u32 %v146, %v144
  %v150 = vshll.u32 %v120, 16
  %v152 = vrot.slane %v150, 1
  %v153 = vsel %vm133, %v148, %v152
  %v154 = vshrl.u32 %v120, 16
  %v156 = vor.u32 %v154, %v152
  %v158 = vshll.u32 %v121, 16
  %v160 = vrot.slane %v158, 1
  %v161 = vsel %vm133, %v156, %v160
  %v162 = vshrl.u32 %v121, 16
  %v164 = vor.u32 %v162, %v160
  %v166 = vshll.u32 %v122, 16
  %v168 = vrot.slane %v166, 1
  %v169 = vsel %vm133, %v164, %v168
  %v170 = vshrl.u32 %v122, 16
  %v172 = vor.u32 %v170, %v168
  %v174 = vshll.u32 %v123, 16
  %v176 = vrot.slane %v174, 1
  %v177 = vsel %vm133, %v172, %v176
  %v178 = vshrl.u32 %v123, 16
  %v180 = vor.u32 %v178, %v176
  %v182 = vshll.u32 %v124, 16
  %v184 = vrot.slane %v182, 1
  %v185 = vsel %vm133, %v180, %v184
  %v186 = vshrl.u32 %v124, 16
  %v188 = vor.u32 %v186, %v184
  %v190 = vshll.u32 %v125, 16
  %v192 = vrot.slane %v190, 1
  %v193 = vsel %vm133, %v188, %v192
  %v194 = vshrl.u32 %v125, 16
  %v196 = vor.u32 %v194, %v192
  %v198 = vshll.u32 %v126, 16
  %v200 = vrot.slane %v198, 1
  %v201 = vsel %vm133, %v196, %v200
  %v202 = vshrl.u32 %v126, 16
  %v204 = vor.u32 %v202, %v200
  %v206 = vshll.u32 %v127, 16
  %v208 = vrot.slane %v206, 1
  %v209 = vsel %vm133, %v204, %v208
  %v210 = vshrl.u32 %v127, 16
  %v212 = vor.u32 %v210, %v208
  %v214 = vshll.u32 %v128, 16
  %v216 = vrot.slane %v214, 1
  %v217 = vsel %vm133, %v212, %v216
  %v218 = vshrl.u32 %v128, 16
  %v220 = vor.u32 %v218, %v216
  %v222 = vshll.u32 %v129, 16
  %v224 = vrot.slane %v222, 1
  %v225 = vsel %vm133, %v220, %v224
  %v226 = vshrl.u32 %v129, 16
  %v228 = vor.u32 %v226, %v224
  %v230 = vshll.u32 %v130, 16
  %v232 = vrot.slane %v230, 1
  %v233 = vsel %vm133, %v228, %v232
  %v234 = vshrl.u32 %v130, 16
  %v236 = vor.u32 %v234, %v232
  %v238 = vshll.u32 %v131, 16
  %v240 = vrot.slane %v238, 1
  %v241 = vsel %vm133, %v236, %v240
  %v242 = vshrl.u32 %v131, 16
  %v244 = vor.u32 %v242, %v240
  %v246 = vshll.u32 %v132, 16
  %v248 = vrot.slane %v246, 1
  %v249 = vsel %vm133, %v244, %v248
  %v250 = vshrl.u32 %v132, 16
  %v252 = vor.u32 %v250, %v248
  %v257 = vunpack.c.l.b16 %v54
  %v258 = vunpack.c.h.b16 %v54
  %v259 = vunpack.c.l.b16 %v55
  %v260 = vunpack.c.h.b16 %v55
  %v261 = vunpack.c.l.b16 %v56
  %v262 = vunpack.c.h.b16 %v56
  %v263 = vunpack.c.l.b16 %v57
  %v264 = vunpack.c.h.b16 %v57
  %v265 = vpack.c.b16 %v259, %v257
  %v266 = vpack.c.b16 %v260, %v258
  %v267 = vpack.c.b16 %v263, %v261
  %v268 = vpack.c.b16 %v264, %v262
  %vm271 = vcmask 244736
  %v273 = vsel %vm271, %v145, 0
  %v276 = vsel %vm271, %v153, 0
  %v279 = vsel %vm271, %v161, 0
  %v282 = vsel %vm271, %v169, 0
  %v285 = vsel %vm271, %v177, 0
  %v288 = vsel %vm271, %v185, 0
  %v291 = vsel %vm271, %v193, 0
  %v294 = vsel %vm271, %v201, 0
  %v297 = vsel %vm271, %v209, 0
  %v300 = vsel %vm271, %v217, 0
  %v303 = vsel %vm271, %v225, 0
  %v306 = vsel %vm271, %v233, 0
  %v309 = vsel %vm271, %v241, 0
  %v312 = vsel %vm271, %v249, 0
  %v315 = vsel %vm271, %v252, 0
  %vm317 = vcmask 1046528
  %v319 = vsel %vm317, %v267, 0
  %v322 = vsel %vm317, %v268, 0
  %324 = vmatpush.bf16.msra.mxu0 0
  %325 = vmatpush.bf16.msra.mxu0 0
  %326 = vmatpush.bf16.msra.mxu0 0
  %327 = vmatpush.bf16.msra.mxu0 0
  %328 = vmatpush.bf16.msra.mxu0 0
  %329 = vmatpush.bf16.msra.mxu0 0
  %330 = vmatpush.bf16.msra.mxu0 %v319
  %331 = vmatpush.bf16.msra.mxu0 %v265
  %332 = vmatmul.bf16.gmra.mxu0 %v273
  %v333 = vpop.f32.mrf.mxu0
  %v334 = vadd.f32 0.0, %v333
  %v335 = vpop.f32.mrf.mxu0
  %v336 = vadd.f32 0.0, %v335
  %337 = vmatmul.bf16.gmra.mxu0 %v276
  %v338 = vpop.f32.mrf.mxu0
  %v339 = vadd.f32 0.0, %v338
  %v340 = vpop.f32.mrf.mxu0
  %v341 = vadd.f32 0.0, %v340
  %342 = vmatmul.bf16.gmra.mxu0 %v279
  %v343 = vpop.f32.mrf.mxu0
  %v344 = vadd.f32 0.0, %v343
  %v345 = vpop.f32.mrf.mxu0
  %v346 = vadd.f32 0.0, %v345
  %347 = vmatmul.bf16.gmra.mxu0 %v282
  %v348 = vpop.f32.mrf.mxu0
  %v349 = vadd.f32 0.0, %v348
  %v350 = vpop.f32.mrf.mxu0
  %v351 = vadd.f32 0.0, %v350
  %352 = vmatmul.bf16.gmra.mxu0 %v285
  %v353 = vpop.f32.mrf.mxu0
  %v354 = vadd.f32 0.0, %v353
  %v355 = vpop.f32.mrf.mxu0
  %v356 = vadd.f32 0.0, %v355
  %357 = vmatmul.bf16.gmra.mxu0 %v288
  %v358 = vpop.f32.mrf.mxu0
  %v359 = vadd.f32 0.0, %v358
  %v360 = vpop.f32.mrf.mxu0
  %v361 = vadd.f32 0.0, %v360
  %362 = vmatmul.bf16.gmra.mxu0 %v291
  %v363 = vpop.f32.mrf.mxu0
  %v364 = vadd.f32 0.0, %v363
  %v365 = vpop.f32.mrf.mxu0
  %v366 = vadd.f32 0.0, %v365
  %367 = vmatmul.bf16.gmra.mxu0 %v294
  %v368 = vpop.f32.mrf.mxu0
  %v369 = vadd.f32 0.0, %v368
  %v370 = vpop.f32.mrf.mxu0
  %v371 = vadd.f32 0.0, %v370
  %372 = vmatmul.bf16.gmra.mxu0 %v297
  %v373 = vpop.f32.mrf.mxu0
  %v374 = vadd.f32 0.0, %v373
  %v375 = vpop.f32.mrf.mxu0
  %v376 = vadd.f32 0.0, %v375
  %377 = vmatmul.bf16.gmra.mxu0 %v300
  %v378 = vpop.f32.mrf.mxu0
  %v379 = vadd.f32 0.0, %v378
  %v380 = vpop.f32.mrf.mxu0
  %v381 = vadd.f32 0.0, %v380
  %382 = vmatmul.bf16.gmra.mxu0 %v303
  %v383 = vpop.f32.mrf.mxu0
  %v384 = vadd.f32 0.0, %v383
  %v385 = vpop.f32.mrf.mxu0
  %v386 = vadd.f32 0.0, %v385
  %387 = vmatmul.bf16.gmra.mxu0 %v306
  %v388 = vpop.f32.mrf.mxu0
  %v389 = vadd.f32 0.0, %v388
  %v390 = vpop.f32.mrf.mxu0
  %v391 = vadd.f32 0.0, %v390
  %392 = vmatmul.bf16.gmra.mxu0 %v309
  %v393 = vpop.f32.mrf.mxu0
  %v394 = vadd.f32 0.0, %v393
  %v395 = vpop.f32.mrf.mxu0
  %v396 = vadd.f32 0.0, %v395
  %397 = vmatmul.bf16.gmra.mxu0 %v312
  %v398 = vpop.f32.mrf.mxu0
  %v399 = vadd.f32 0.0, %v398
  %v400 = vpop.f32.mrf.mxu0
  %v401 = vadd.f32 0.0, %v400
  %402 = vmatmul.bf16.gmra.mxu0 %v315
  %v403 = vpop.f32.mrf.mxu0
  %v404 = vadd.f32 0.0, %v403
  %v405 = vpop.f32.mrf.mxu0
  %v406 = vadd.f32 0.0, %v405
  %407 = vdwg.mxu0
  %408 = vmatpush.bf16.msra.mxu0 0
  %409 = vmatpush.bf16.msra.mxu0 0
  %410 = vmatpush.bf16.msra.mxu0 0
  %411 = vmatpush.bf16.msra.mxu0 0
  %412 = vmatpush.bf16.msra.mxu0 0
  %413 = vmatpush.bf16.msra.mxu0 0
  %414 = vmatpush.bf16.msra.mxu0 %v322
  %415 = vmatpush.bf16.msra.mxu0 %v266
  %416 = vmatmul.bf16.gmra.mxu0 %v273
  %v417 = vpop.f32.mrf.mxu0
  %v418 = vadd.f32 0.0, %v417
  %v419 = vpop.f32.mrf.mxu0
  %v420 = vadd.f32 0.0, %v419
  %421 = vmatmul.bf16.gmra.mxu0 %v276
  %v422 = vpop.f32.mrf.mxu0
  %v423 = vadd.f32 0.0, %v422
  %v424 = vpop.f32.mrf.mxu0
  %v425 = vadd.f32 0.0, %v424
  %426 = vmatmul.bf16.gmra.mxu0 %v279
  %v427 = vpop.f32.mrf.mxu0
  %v428 = vadd.f32 0.0, %v427
  %v429 = vpop.f32.mrf.mxu0
  %v430 = vadd.f32 0.0, %v429
  %431 = vmatmul.bf16.gmra.mxu0 %v282
  %v432 = vpop.f32.mrf.mxu0
  %v433 = vadd.f32 0.0, %v432
  %v434 = vpop.f32.mrf.mxu0
  %v435 = vadd.f32 0.0, %v434
  %436 = vmatmul.bf16.gmra.mxu0 %v285
  %v437 = vpop.f32.mrf.mxu0
  %v438 = vadd.f32 0.0, %v437
  %v439 = vpop.f32.mrf.mxu0
  %v440 = vadd.f32 0.0, %v439
  %441 = vmatmul.bf16.gmra.mxu0 %v288
  %v442 = vpop.f32.mrf.mxu0
  %v443 = vadd.f32 0.0, %v442
  %v444 = vpop.f32.mrf.mxu0
  %v445 = vadd.f32 0.0, %v444
  %446 = vmatmul.bf16.gmra.mxu0 %v291
  %v447 = vpop.f32.mrf.mxu0
  %v448 = vadd.f32 0.0, %v447
  %v449 = vpop.f32.mrf.mxu0
  %v450 = vadd.f32 0.0, %v449
  %451 = vmatmul.bf16.gmra.mxu0 %v294
  %v452 = vpop.f32.mrf.mxu0
  %v453 = vadd.f32 0.0, %v452
  %v454 = vpop.f32.mrf.mxu0
  %v455 = vadd.f32 0.0, %v454
  %456 = vmatmul.bf16.gmra.mxu0 %v297
  %v457 = vpop.f32.mrf.mxu0
  %v458 = vadd.f32 0.0, %v457
  %v459 = vpop.f32.mrf.mxu0
  %v460 = vadd.f32 0.0, %v459
  %461 = vmatmul.bf16.gmra.mxu0 %v300
  %v462 = vpop.f32.mrf.mxu0
  %v463 = vadd.f32 0.0, %v462
  %v464 = vpop.f32.mrf.mxu0
  %v465 = vadd.f32 0.0, %v464
  %466 = vmatmul.bf16.gmra.mxu0 %v303
  %v467 = vpop.f32.mrf.mxu0
  %v468 = vadd.f32 0.0, %v467
  %v469 = vpop.f32.mrf.mxu0
  %v470 = vadd.f32 0.0, %v469
  %471 = vmatmul.bf16.gmra.mxu0 %v306
  %v472 = vpop.f32.mrf.mxu0
  %v473 = vadd.f32 0.0, %v472
  %v474 = vpop.f32.mrf.mxu0
  %v475 = vadd.f32 0.0, %v474
  %476 = vmatmul.bf16.gmra.mxu0 %v309
  %v477 = vpop.f32.mrf.mxu0
  %v478 = vadd.f32 0.0, %v477
  %v479 = vpop.f32.mrf.mxu0
  %v480 = vadd.f32 0.0, %v479
  %481 = vmatmul.bf16.gmra.mxu0 %v312
  %v482 = vpop.f32.mrf.mxu0
  %v483 = vadd.f32 0.0, %v482
  %v484 = vpop.f32.mrf.mxu0
  %v485 = vadd.f32 0.0, %v484
  %486 = vmatmul.bf16.gmra.mxu0 %v315
  %v487 = vpop.f32.mrf.mxu0
  %v488 = vadd.f32 0.0, %v487
  %v489 = vpop.f32.mrf.mxu0
  %v490 = vadd.f32 0.0, %v489
  %491 = vdwg.mxu0
  %v493 = vunpack.c.l.b16 %v47
  %v494 = vpack.c.b16 %v493, %v116
  %v499 = vunpack.c.l.b16 %v48
  %v500 = vunpack.c.h.b16 %v48
  %v501 = vunpack.c.l.b16 %v49
  %v502 = vunpack.c.h.b16 %v49
  %v503 = vunpack.c.l.b16 %v50
  %v504 = vunpack.c.h.b16 %v50
  %v505 = vunpack.c.l.b16 %v51
  %v506 = vunpack.c.h.b16 %v51
  %v507 = vpack.c.b16 %v501, %v499
  %v508 = vpack.c.b16 %v502, %v500
  %v509 = vpack.c.b16 %v505, %v503
  %v510 = vpack.c.b16 %v506, %v504
  %v513 = vsel %vm271, %v118, 0
  %v515 = vsel %vm271, %v119, 0
  %v517 = vsel %vm271, %v120, 0
  %v519 = vsel %vm271, %v121, 0
  %v521 = vsel %vm271, %v122, 0
  %v523 = vsel %vm271, %v123, 0
  %v525 = vsel %vm271, %v124, 0
  %v527 = vsel %vm271, %v125, 0
  %v529 = vsel %vm271, %v126, 0
  %v531 = vsel %vm271, %v127, 0
  %v533 = vsel %vm271, %v128, 0
  %v535 = vsel %vm271, %v129, 0
  %v537 = vsel %vm271, %v130, 0
  %v539 = vsel %vm271, %v131, 0
  %v542 = vsel %vm271, %v494, 0
  %v545 = vsel %vm317, %v509, 0
  %v548 = vsel %vm317, %v510, 0
  %550 = vmatpush.bf16.msra.mxu0 0
  %551 = vmatpush.bf16.msra.mxu0 0
  %552 = vmatpush.bf16.msra.mxu0 0
  %553 = vmatpush.bf16.msra.mxu0 0
  %554 = vmatpush.bf16.msra.mxu0 0
  %555 = vmatpush.bf16.msra.mxu0 0
  %556 = vmatpush.bf16.msra.mxu0 %v545
  %557 = vmatpush.bf16.msra.mxu0 %v507
  %558 = vmatmul.bf16.gmra.mxu0 %v513
  %v559 = vpop.f32.mrf.mxu0
  %v560 = vadd.f32 %v334, %v559
  %v561 = vpop.f32.mrf.mxu0
  %v562 = vadd.f32 %v336, %v561
  %563 = vmatmul.bf16.gmra.mxu0 %v515
  %v564 = vpop.f32.mrf.mxu0
  %v565 = vadd.f32 %v339, %v564
  %v566 = vpop.f32.mrf.mxu0
  %v567 = vadd.f32 %v341, %v566
  %568 = vmatmul.bf16.gmra.mxu0 %v517
  %v569 = vpop.f32.mrf.mxu0
  %v570 = vadd.f32 %v344, %v569
  %v571 = vpop.f32.mrf.mxu0
  %v572 = vadd.f32 %v346, %v571
  %573 = vmatmul.bf16.gmra.mxu0 %v519
  %v574 = vpop.f32.mrf.mxu0
  %v575 = vadd.f32 %v349, %v574
  %v576 = vpop.f32.mrf.mxu0
  %v577 = vadd.f32 %v351, %v576
  %578 = vmatmul.bf16.gmra.mxu0 %v521
  %v579 = vpop.f32.mrf.mxu0
  %v580 = vadd.f32 %v354, %v579
  %v581 = vpop.f32.mrf.mxu0
  %v582 = vadd.f32 %v356, %v581
  %583 = vmatmul.bf16.gmra.mxu0 %v523
  %v584 = vpop.f32.mrf.mxu0
  %v585 = vadd.f32 %v359, %v584
  %v586 = vpop.f32.mrf.mxu0
  %v587 = vadd.f32 %v361, %v586
  %588 = vmatmul.bf16.gmra.mxu0 %v525
  %v589 = vpop.f32.mrf.mxu0
  %v590 = vadd.f32 %v364, %v589
  %v591 = vpop.f32.mrf.mxu0
  %v592 = vadd.f32 %v366, %v591
  %593 = vmatmul.bf16.gmra.mxu0 %v527
  %v594 = vpop.f32.mrf.mxu0
  %v595 = vadd.f32 %v369, %v594
  %v596 = vpop.f32.mrf.mxu0
  %v597 = vadd.f32 %v371, %v596
  %598 = vmatmul.bf16.gmra.mxu0 %v529
  %v599 = vpop.f32.mrf.mxu0
  %v600 = vadd.f32 %v374, %v599
  %v601 = vpop.f32.mrf.mxu0
  %v602 = vadd.f32 %v376, %v601
  %603 = vmatmul.bf16.gmra.mxu0 %v531
  %v604 = vpop.f32.mrf.mxu0
  %v605 = vadd.f32 %v379, %v604
  %v606 = vpop.f32.mrf.mxu0
  %v607 = vadd.f32 %v381, %v606
  %608 = vmatmul.bf16.gmra.mxu0 %v533
  %v609 = vpop.f32.mrf.mxu0
  %v610 = vadd.f32 %v384, %v609
  %v611 = vpop.f32.mrf.mxu0
  %v612 = vadd.f32 %v386, %v611
  %613 = vmatmul.bf16.gmra.mxu0 %v535
  %v614 = vpop.f32.mrf.mxu0
  %v615 = vadd.f32 %v389, %v614
  %v616 = vpop.f32.mrf.mxu0
  %v617 = vadd.f32 %v391, %v616
  %618 = vmatmul.bf16.gmra.mxu0 %v537
  %v619 = vpop.f32.mrf.mxu0
  %v620 = vadd.f32 %v394, %v619
  %v621 = vpop.f32.mrf.mxu0
  %v622 = vadd.f32 %v396, %v621
  %623 = vmatmul.bf16.gmra.mxu0 %v539
  %v624 = vpop.f32.mrf.mxu0
  %v625 = vadd.f32 %v399, %v624
  %v626 = vpop.f32.mrf.mxu0
  %v627 = vadd.f32 %v401, %v626
  %628 = vmatmul.bf16.gmra.mxu0 %v542
  %v629 = vpop.f32.mrf.mxu0
  %v630 = vadd.f32 %v404, %v629
  %v631 = vpop.f32.mrf.mxu0
  %v632 = vadd.f32 %v406, %v631
  %633 = vdwg.mxu0
  %634 = vmatpush.bf16.msra.mxu0 0
  %635 = vmatpush.bf16.msra.mxu0 0
  %636 = vmatpush.bf16.msra.mxu0 0
  %637 = vmatpush.bf16.msra.mxu0 0
  %638 = vmatpush.bf16.msra.mxu0 0
  %639 = vmatpush.bf16.msra.mxu0 0
  %640 = vmatpush.bf16.msra.mxu0 %v548
  %641 = vmatpush.bf16.msra.mxu0 %v508
  %642 = vmatmul.bf16.gmra.mxu0 %v513
  %v643 = vpop.f32.mrf.mxu0
  %v644 = vadd.f32 %v418, %v643
  %v645 = vpop.f32.mrf.mxu0
  %v646 = vadd.f32 %v420, %v645
  %647 = vmatmul.bf16.gmra.mxu0 %v515
  %v648 = vpop.f32.mrf.mxu0
  %v649 = vadd.f32 %v423, %v648
  %v650 = vpop.f32.mrf.mxu0
  %v651 = vadd.f32 %v425, %v650
  %652 = vmatmul.bf16.gmra.mxu0 %v517
  %v653 = vpop.f32.mrf.mxu0
  %v654 = vadd.f32 %v428, %v653
  %v655 = vpop.f32.mrf.mxu0
  %v656 = vadd.f32 %v430, %v655
  %657 = vmatmul.bf16.gmra.mxu0 %v519
  %v658 = vpop.f32.mrf.mxu0
  %v659 = vadd.f32 %v433, %v658
  %v660 = vpop.f32.mrf.mxu0
  %v661 = vadd.f32 %v435, %v660
  %662 = vmatmul.bf16.gmra.mxu0 %v521
  %v663 = vpop.f32.mrf.mxu0
  %v664 = vadd.f32 %v438, %v663
  %v665 = vpop.f32.mrf.mxu0
  %v666 = vadd.f32 %v440, %v665
  %667 = vmatmul.bf16.gmra.mxu0 %v523
  %v668 = vpop.f32.mrf.mxu0
  %v669 = vadd.f32 %v443, %v668
  %v670 = vpop.f32.mrf.mxu0
  %v671 = vadd.f32 %v445, %v670
  %672 = vmatmul.bf16.gmra.mxu0 %v525
  %v673 = vpop.f32.mrf.mxu0
  %v674 = vadd.f32 %v448, %v673
  %v675 = vpop.f32.mrf.mxu0
  %v676 = vadd.f32 %v450, %v675
  %677 = vmatmul.bf16.gmra.mxu0 %v527
  %v678 = vpop.f32.mrf.mxu0
  %v679 = vadd.f32 %v453, %v678
  %v680 = vpop.f32.mrf.mxu0
  %v681 = vadd.f32 %v455, %v680
  %682 = vmatmul.bf16.gmra.mxu0 %v529
  %v683 = vpop.f32.mrf.mxu0
  %v684 = vadd.f32 %v458, %v683
  %v685 = vpop.f32.mrf.mxu0
  %v686 = vadd.f32 %v460, %v685
  %687 = vmatmul.bf16.gmra.mxu0 %v531
  %v688 = vpop.f32.mrf.mxu0
  %v689 = vadd.f32 %v463, %v688
  %v690 = vpop.f32.mrf.mxu0
  %v691 = vadd.f32 %v465, %v690
  %692 = vmatmul.bf16.gmra.mxu0 %v533
  %v693 = vpop.f32.mrf.mxu0
  %v694 = vadd.f32 %v468, %v693
  %v695 = vpop.f32.mrf.mxu0
  %v696 = vadd.f32 %v470, %v695
  %697 = vmatmul.bf16.gmra.mxu0 %v535
  %v698 = vpop.f32.mrf.mxu0
  %v699 = vadd.f32 %v473, %v698
  %v700 = vpop.f32.mrf.mxu0
  %v701 = vadd.f32 %v475, %v700
  %702 = vmatmul.bf16.gmra.mxu0 %v537
  %v703 = vpop.f32.mrf.mxu0
  %v704 = vadd.f32 %v478, %v703
  %v705 = vpop.f32.mrf.mxu0
  %v706 = vadd.f32 %v480, %v705
  %707 = vmatmul.bf16.gmra.mxu0 %v539
  %v708 = vpop.f32.mrf.mxu0
  %v709 = vadd.f32 %v483, %v708
  %v710 = vpop.f32.mrf.mxu0
  %v711 = vadd.f32 %v485, %v710
  %712 = vmatmul.bf16.gmra.mxu0 %v542
  %v713 = vpop.f32.mrf.mxu0
  %v714 = vadd.f32 %v488, %v713
  %v715 = vpop.f32.mrf.mxu0
  %v716 = vadd.f32 %v490, %v715
  %717 = vdwg.mxu0
  %v718 = vld [vmem:[%s0] sm:$0xe]
  %s719 = scalar_lea.vmem %s1, 64
  %v720 = vld [vmem:[%s719] sm:$0xff]
  %v721 = vld [vmem:[%s719 + $0x8] sm:$0xff]
  %v722 = vld [vmem:[%s719 + $0x10] sm:$0xff]
  %v723 = vld [vmem:[%s719 + $0x18] sm:$0x77]
  %v725 = vunpack.c.l.b16 %v718
  %v726 = vpack.c.b16 %v89, %v725
  %vm727 = vcmask 1046528
  %v728 = vrot.slane %v726, 1
  %v729 = vrot.slane %v119, 1
  %v730 = vsel %vm727, %v728, %v729
  %v731 = vrot.slane %v120, 1
  %v732 = vsel %vm727, %v729, %v731
  %v733 = vrot.slane %v121, 1
  %v734 = vsel %vm727, %v731, %v733
  %v735 = vrot.slane %v122, 1
  %v736 = vsel %vm727, %v733, %v735
  %v737 = vrot.slane %v123, 1
  %v738 = vsel %vm727, %v735, %v737
  %v739 = vrot.slane %v124, 1
  %v740 = vsel %vm727, %v737, %v739
  %v741 = vrot.slane %v125, 1
  %v742 = vsel %vm727, %v739, %v741
  %v743 = vrot.slane %v126, 1
  %v744 = vsel %vm727, %v741, %v743
  %v745 = vrot.slane %v127, 1
  %v746 = vsel %vm727, %v743, %v745
  %v747 = vrot.slane %v128, 1
  %v748 = vsel %vm727, %v745, %v747
  %v749 = vrot.slane %v129, 1
  %v750 = vsel %vm727, %v747, %v749
  %v751 = vrot.slane %v130, 1
  %v752 = vsel %vm727, %v749, %v751
  %v753 = vrot.slane %v131, 1
  %v754 = vsel %vm727, %v751, %v753
  %v755 = vrot.slane %v132, 1
  %v756 = vsel %vm727, %v753, %v755
  %v761 = vunpack.c.l.b16 %v720
  %v762 = vunpack.c.h.b16 %v720
  %v763 = vunpack.c.l.b16 %v721
  %v764 = vunpack.c.h.b16 %v721
  %v765 = vunpack.c.l.b16 %v722
  %v766 = vunpack.c.h.b16 %v722
  %v767 = vunpack.c.l.b16 %v723
  %v768 = vunpack.c.h.b16 %v723
  %v769 = vpack.c.b16 %v763, %v761
  %v770 = vpack.c.b16 %v764, %v762
  %v771 = vpack.c.b16 %v767, %v765
  %v772 = vpack.c.b16 %v768, %v766
  %v776 = vsel %vm271, %v730, 0
  %v779 = vsel %vm271, %v732, 0
  %v782 = vsel %vm271, %v734, 0
  %v785 = vsel %vm271, %v736, 0
  %v788 = vsel %vm271, %v738, 0
  %v791 = vsel %vm271, %v740, 0
  %v794 = vsel %vm271, %v742, 0
  %v797 = vsel %vm271, %v744, 0
  %v800 = vsel %vm271, %v746, 0
  %v803 = vsel %vm271, %v748, 0
  %v806 = vsel %vm271, %v750, 0
  %v809 = vsel %vm271, %v752, 0
  %v812 = vsel %vm271, %v754, 0
  %v815 = vsel %vm271, %v756, 0
  %v818 = vsel %vm271, %v755, 0
  %v821 = vsel %vm317, %v771, 0
  %v824 = vsel %vm317, %v772, 0
  %826 = vmatpush.bf16.msra.mxu0 0
  %827 = vmatpush.bf16.msra.mxu0 0
  %828 = vmatpush.bf16.msra.mxu0 0
  %829 = vmatpush.bf16.msra.mxu0 0
  %830 = vmatpush.bf16.msra.mxu0 0
  %831 = vmatpush.bf16.msra.mxu0 0
  %832 = vmatpush.bf16.msra.mxu0 %v821
  %833 = vmatpush.bf16.msra.mxu0 %v769
  %834 = vmatmul.bf16.gmra.mxu0 %v776
  %v835 = vpop.f32.mrf.mxu0
  %v836 = vadd.f32 0.0, %v835
  %v837 = vpop.f32.mrf.mxu0
  %v838 = vadd.f32 0.0, %v837
  %839 = vmatmul.bf16.gmra.mxu0 %v779
  %v840 = vpop.f32.mrf.mxu0
  %v841 = vadd.f32 0.0, %v840
  %v842 = vpop.f32.mrf.mxu0
  %v843 = vadd.f32 0.0, %v842
  %844 = vmatmul.bf16.gmra.mxu0 %v782
  %v845 = vpop.f32.mrf.mxu0
  %v846 = vadd.f32 0.0, %v845
  %v847 = vpop.f32.mrf.mxu0
  %v848 = vadd.f32 0.0, %v847
  %849 = vmatmul.bf16.gmra.mxu0 %v785
  %v850 = vpop.f32.mrf.mxu0
  %v851 = vadd.f32 0.0, %v850
  %v852 = vpop.f32.mrf.mxu0
  %v853 = vadd.f32 0.0, %v852
  %854 = vmatmul.bf16.gmra.mxu0 %v788
  %v855 = vpop.f32.mrf.mxu0
  %v856 = vadd.f32 0.0, %v855
  %v857 = vpop.f32.mrf.mxu0
  %v858 = vadd.f32 0.0, %v857
  %859 = vmatmul.bf16.gmra.mxu0 %v791
  %v860 = vpop.f32.mrf.mxu0
  %v861 = vadd.f32 0.0, %v860
  %v862 = vpop.f32.mrf.mxu0
  %v863 = vadd.f32 0.0, %v862
  %864 = vmatmul.bf16.gmra.mxu0 %v794
  %v865 = vpop.f32.mrf.mxu0
  %v866 = vadd.f32 0.0, %v865
  %v867 = vpop.f32.mrf.mxu0
  %v868 = vadd.f32 0.0, %v867
  %869 = vmatmul.bf16.gmra.mxu0 %v797
  %v870 = vpop.f32.mrf.mxu0
  %v871 = vadd.f32 0.0, %v870
  %v872 = vpop.f32.mrf.mxu0
  %v873 = vadd.f32 0.0, %v872
  %874 = vmatmul.bf16.gmra.mxu0 %v800
  %v875 = vpop.f32.mrf.mxu0
  %v876 = vadd.f32 0.0, %v875
  %v877 = vpop.f32.mrf.mxu0
  %v878 = vadd.f32 0.0, %v877
  %879 = vmatmul.bf16.gmra.mxu0 %v803
  %v880 = vpop.f32.mrf.mxu0
  %v881 = vadd.f32 0.0, %v880
  %v882 = vpop.f32.mrf.mxu0
  %v883 = vadd.f32 0.0, %v882
  %884 = vmatmul.bf16.gmra.mxu0 %v806
  %v885 = vpop.f32.mrf.mxu0
  %v886 = vadd.f32 0.0, %v885
  %v887 = vpop.f32.mrf.mxu0
  %v888 = vadd.f32 0.0, %v887
  %889 = vmatmul.bf16.gmra.mxu0 %v809
  %v890 = vpop.f32.mrf.mxu0
  %v891 = vadd.f32 0.0, %v890
  %v892 = vpop.f32.mrf.mxu0
  %v893 = vadd.f32 0.0, %v892
  %894 = vmatmul.bf16.gmra.mxu0 %v812
  %v895 = vpop.f32.mrf.mxu0
  %v896 = vadd.f32 0.0, %v895
  %v897 = vpop.f32.mrf.mxu0
  %v898 = vadd.f32 0.0, %v897
  %899 = vmatmul.bf16.gmra.mxu0 %v815
  %v900 = vpop.f32.mrf.mxu0
  %v901 = vadd.f32 0.0, %v900
  %v902 = vpop.f32.mrf.mxu0
  %v903 = vadd.f32 0.0, %v902
  %904 = vmatmul.bf16.gmra.mxu0 %v818
  %v905 = vpop.f32.mrf.mxu0
  %v906 = vadd.f32 0.0, %v905
  %v907 = vpop.f32.mrf.mxu0
  %v908 = vadd.f32 0.0, %v907
  %909 = vdwg.mxu0
  %910 = vmatpush.bf16.msra.mxu0 0
  %911 = vmatpush.bf16.msra.mxu0 0
  %912 = vmatpush.bf16.msra.mxu0 0
  %913 = vmatpush.bf16.msra.mxu0 0
  %914 = vmatpush.bf16.msra.mxu0 0
  %915 = vmatpush.bf16.msra.mxu0 0
  %916 = vmatpush.bf16.msra.mxu0 %v824
  %917 = vmatpush.bf16.msra.mxu0 %v770
  %918 = vmatmul.bf16.gmra.mxu0 %v776
  %v919 = vpop.f32.mrf.mxu0
  %v920 = vadd.f32 0.0, %v919
  %v921 = vpop.f32.mrf.mxu0
  %v922 = vadd.f32 0.0, %v921
  %923 = vmatmul.bf16.gmra.mxu0 %v779
  %v924 = vpop.f32.mrf.mxu0
  %v925 = vadd.f32 0.0, %v924
  %v926 = vpop.f32.mrf.mxu0
  %v927 = vadd.f32 0.0, %v926
  %928 = vmatmul.bf16.gmra.mxu0 %v782
  %v929 = vpop.f32.mrf.mxu0
  %v930 = vadd.f32 0.0, %v929
  %v931 = vpop.f32.mrf.mxu0
  %v932 = vadd.f32 0.0, %v931
  %933 = vmatmul.bf16.gmra.mxu0 %v785
  %v934 = vpop.f32.mrf.mxu0
  %v935 = vadd.f32 0.0, %v934
  %v936 = vpop.f32.mrf.mxu0
  %v937 = vadd.f32 0.0, %v936
  %938 = vmatmul.bf16.gmra.mxu0 %v788
  %v939 = vpop.f32.mrf.mxu0
  %v940 = vadd.f32 0.0, %v939
  %v941 = vpop.f32.mrf.mxu0
  %v942 = vadd.f32 0.0, %v941
  %943 = vmatmul.bf16.gmra.mxu0 %v791
  %v944 = vpop.f32.mrf.mxu0
  %v945 = vadd.f32 0.0, %v944
  %v946 = vpop.f32.mrf.mxu0
  %v947 = vadd.f32 0.0, %v946
  %948 = vmatmul.bf16.gmra.mxu0 %v794
  %v949 = vpop.f32.mrf.mxu0
  %v950 = vadd.f32 0.0, %v949
  %v951 = vpop.f32.mrf.mxu0
  %v952 = vadd.f32 0.0, %v951
  %953 = vmatmul.bf16.gmra.mxu0 %v797
  %v954 = vpop.f32.mrf.mxu0
  %v955 = vadd.f32 0.0, %v954
  %v956 = vpop.f32.mrf.mxu0
  %v957 = vadd.f32 0.0, %v956
  %958 = vmatmul.bf16.gmra.mxu0 %v800
  %v959 = vpop.f32.mrf.mxu0
  %v960 = vadd.f32 0.0, %v959
  %v961 = vpop.f32.mrf.mxu0
  %v962 = vadd.f32 0.0, %v961
  %963 = vmatmul.bf16.gmra.mxu0 %v803
  %v964 = vpop.f32.mrf.mxu0
  %v965 = vadd.f32 0.0, %v964
  %v966 = vpop.f32.mrf.mxu0
  %v967 = vadd.f32 0.0, %v966
  %968 = vmatmul.bf16.gmra.mxu0 %v806
  %v969 = vpop.f32.mrf.mxu0
  %v970 = vadd.f32 0.0, %v969
  %v971 = vpop.f32.mrf.mxu0
  %v972 = vadd.f32 0.0, %v971
  %973 = vmatmul.bf16.gmra.mxu0 %v809
  %v974 = vpop.f32.mrf.mxu0
  %v975 = vadd.f32 0.0, %v974
  %v976 = vpop.f32.mrf.mxu0
  %v977 = vadd.f32 0.0, %v976
  %978 = vmatmul.bf16.gmra.mxu0 %v812
  %v979 = vpop.f32.mrf.mxu0
  %v980 = vadd.f32 0.0, %v979
  %v981 = vpop.f32.mrf.mxu0
  %v982 = vadd.f32 0.0, %v981
  %983 = vmatmul.bf16.gmra.mxu0 %v815
  %v984 = vpop.f32.mrf.mxu0
  %v985 = vadd.f32 0.0, %v984
  %v986 = vpop.f32.mrf.mxu0
  %v987 = vadd.f32 0.0, %v986
  %988 = vmatmul.bf16.gmra.mxu0 %v818
  %v989 = vpop.f32.mrf.mxu0
  %v990 = vadd.f32 0.0, %v989
  %v991 = vpop.f32.mrf.mxu0
  %v992 = vadd.f32 0.0, %v991
  %993 = vdwg.mxu0
  %v994 = vadd.f32 %v560, %v836
  %v995 = vadd.f32 %v644, %v920
  %v996 = vadd.f32 %v562, %v838
  %v997 = vadd.f32 %v646, %v922
  %v998 = vadd.f32 %v565, %v841
  %v999 = vadd.f32 %v649, %v925
  %v1000 = vadd.f32 %v567, %v843
  %v1001 = vadd.f32 %v651, %v927
  %v1002 = vadd.f32 %v570, %v846
  %v1003 = vadd.f32 %v654, %v930
  %v1004 = vadd.f32 %v572, %v848
  %v1005 = vadd.f32 %v656, %v932
  %v1006 = vadd.f32 %v575, %v851
  %v1007 = vadd.f32 %v659, %v935
  %v1008 = vadd.f32 %v577, %v853
  %v1009 = vadd.f32 %v661, %v937
  %v1010 = vadd.f32 %v580, %v856
  %v1011 = vadd.f32 %v664, %v940
  %v1012 = vadd.f32 %v582, %v858
  %v1013 = vadd.f32 %v666, %v942
  %v1014 = vadd.f32 %v585, %v861
  %v1015 = vadd.f32 %v669, %v945
  %v1016 = vadd.f32 %v587, %v863
  %v1017 = vadd.f32 %v671, %v947
  %v1018 = vadd.f32 %v590, %v866
  %v1019 = vadd.f32 %v674, %v950
  %v1020 = vadd.f32 %v592, %v868
  %v1021 = vadd.f32 %v676, %v952
  %v1022 = vadd.f32 %v595, %v871
  %v1023 = vadd.f32 %v679, %v955
  %v1024 = vadd.f32 %v597, %v873
  %v1025 = vadd.f32 %v681, %v957
  %v1026 = vadd.f32 %v600, %v876
  %v1027 = vadd.f32 %v684, %v960
  %v1028 = vadd.f32 %v602, %v878
  %v1029 = vadd.f32 %v686, %v962
  %v1030 = vadd.f32 %v605, %v881
  %v1031 = vadd.f32 %v689, %v965
  %v1032 = vadd.f32 %v607, %v883
  %v1033 = vadd.f32 %v691, %v967
  %v1034 = vadd.f32 %v610, %v886
  %v1035 = vadd.f32 %v694, %v970
  %v1036 = vadd.f32 %v612, %v888
  %v1037 = vadd.f32 %v696, %v972
  %v1038 = vadd.f32 %v615, %v891
  %v1039 = vadd.f32 %v699, %v975
  %v1040 = vadd.f32 %v617, %v893
  %v1041 = vadd.f32 %v701, %v977
  %v1042 = vadd.f32 %v620, %v896
  %v1043 = vadd.f32 %v704, %v980
  %v1044 = vadd.f32 %v622, %v898
  %v1045 = vadd.f32 %v706, %v982
  %v1046 = vadd.f32 %v625, %v901
  %v1047 = vadd.f32 %v709, %v985
  %v1048 = vadd.f32 %v627, %v903
  %v1049 = vadd.f32 %v711, %v987
  %v1050 = vadd.f32 %v630, %v906
  %v1051 = vadd.f32 %v714, %v990
  %v1052 = vadd.f32 %v632, %v908
  %v1053 = vadd.f32 %v716, %v992
  %v1054 = vld [vmem:[%s2] sm:$0x3]
  %v1056 = vperm.slane %v1054, 0
  %v1057 = vperm.slane %v1054, 1
  %v1060 = vadd.f32 %v994, %v1056
  %v1061 = vadd.f32 %v995, %v1057
  %v1062 = vadd.f32 %v996, %v1056
  %v1063 = vadd.f32 %v997, %v1057
  %v1064 = vadd.f32 %v998, %v1056
  %v1065 = vadd.f32 %v999, %v1057
  %v1066 = vadd.f32 %v1000, %v1056
  %v1067 = vadd.f32 %v1001, %v1057
  %v1068 = vadd.f32 %v1002, %v1056
  %v1069 = vadd.f32 %v1003, %v1057
  %v1070 = vadd.f32 %v1004, %v1056
  %v1071 = vadd.f32 %v1005, %v1057
  %v1072 = vadd.f32 %v1006, %v1056
  %v1073 = vadd.f32 %v1007, %v1057
  %v1074 = vadd.f32 %v1008, %v1056
  %v1075 = vadd.f32 %v1009, %v1057
  %v1076 = vadd.f32 %v1010, %v1056
  %v1077 = vadd.f32 %v1011, %v1057
  %v1078 = vadd.f32 %v1012, %v1056
  %v1079 = vadd.f32 %v1013, %v1057
  %v1080 = vadd.f32 %v1014, %v1056
  %v1081 = vadd.f32 %v1015, %v1057
  %v1082 = vadd.f32 %v1016, %v1056
  %v1083 = vadd.f32 %v1017, %v1057
  %v1084 = vadd.f32 %v1018, %v1056
  %v1085 = vadd.f32 %v1019, %v1057
  %v1086 = vadd.f32 %v1020, %v1056
  %v1087 = vadd.f32 %v1021, %v1057
  %v1088 = vadd.f32 %v1022, %v1056
  %v1089 = vadd.f32 %v1023, %v1057
  %v1090 = vadd.f32 %v1024, %v1056
  %v1091 = vadd.f32 %v1025, %v1057
  %v1092 = vadd.f32 %v1026, %v1056
  %v1093 = vadd.f32 %v1027, %v1057
  %v1094 = vadd.f32 %v1028, %v1056
  %v1095 = vadd.f32 %v1029, %v1057
  %v1096 = vadd.f32 %v1030, %v1056
  %v1097 = vadd.f32 %v1031, %v1057
  %v1098 = vadd.f32 %v1032, %v1056
  %v1099 = vadd.f32 %v1033, %v1057
  %v1100 = vadd.f32 %v1034, %v1056
  %v1101 = vadd.f32 %v1035, %v1057
  %v1102 = vadd.f32 %v1036, %v1056
  %v1103 = vadd.f32 %v1037, %v1057
  %v1104 = vadd.f32 %v1038, %v1056
  %v1105 = vadd.f32 %v1039, %v1057
  %v1106 = vadd.f32 %v1040, %v1056
  %v1107 = vadd.f32 %v1041, %v1057
  %v1108 = vadd.f32 %v1042, %v1056
  %v1109 = vadd.f32 %v1043, %v1057
  %v1110 = vadd.f32 %v1044, %v1056
  %v1111 = vadd.f32 %v1045, %v1057
  %v1112 = vadd.f32 %v1046, %v1056
  %v1113 = vadd.f32 %v1047, %v1057
  %v1114 = vadd.f32 %v1048, %v1056
  %v1115 = vadd.f32 %v1049, %v1057
  %v1116 = vadd.f32 %v1050, %v1056
  %v1117 = vadd.f32 %v1051, %v1057
  %v1118 = vadd.f32 %v1052, %v1056
  %v1119 = vadd.f32 %v1053, %v1057
  %v1120 = vmax.f32 %v1060, 0.0
  %v1121 = vmax.f32 %v1061, 0.0
  %v1122 = vmax.f32 %v1062, 0.0
  %v1123 = vmax.f32 %v1063, 0.0
  %v1124 = vmax.f32 %v1064, 0.0
  %v1125 = vmax.f32 %v1065, 0.0
  %v1126 = vmax.f32 %v1066, 0.0
  %v1127 = vmax.f32 %v1067, 0.0
  %v1128 = vmax.f32 %v1068, 0.0
  %v1129 = vmax.f32 %v1069, 0.0
  %v1130 = vmax.f32 %v1070, 0.0
  %v1131 = vmax.f32 %v1071, 0.0
  %v1132 = vmax.f32 %v1072, 0.0
  %v1133 = vmax.f32 %v1073, 0.0
  %v1134 = vmax.f32 %v1074, 0.0
  %v1135 = vmax.f32 %v1075, 0.0
  %v1136 = vmax.f32 %v1076, 0.0
  %v1137 = vmax.f32 %v1077, 0.0
  %v1138 = vmax.f32 %v1078, 0.0
  %v1139 = vmax.f32 %v1079, 0.0
  %v1140 = vmax.f32 %v1080, 0.0
  %v1141 = vmax.f32 %v1081, 0.0
  %v1142 = vmax.f32 %v1082, 0.0
  %v1143 = vmax.f32 %v1083, 0.0
  %v1144 = vmax.f32 %v1084, 0.0
  %v1145 = vmax.f32 %v1085, 0.0
  %v1146 = vmax.f32 %v1086, 0.0
  %v1147 = vmax.f32 %v1087, 0.0
  %v1148 = vmax.f32 %v1088, 0.0
  %v1149 = vmax.f32 %v1089, 0.0
  %v1150 = vmax.f32 %v1090, 0.0
  %v1151 = vmax.f32 %v1091, 0.0
  %v1152 = vmax.f32 %v1092, 0.0
  %v1153 = vmax.f32 %v1093, 0.0
  %v1154 = vmax.f32 %v1094, 0.0
  %v1155 = vmax.f32 %v1095, 0.0
  %v1156 = vmax.f32 %v1096, 0.0
  %v1157 = vmax.f32 %v1097, 0.0
  %v1158 = vmax.f32 %v1098, 0.0
  %v1159 = vmax.f32 %v1099, 0.0
  %v1160 = vmax.f32 %v1100, 0.0
  %v1161 = vmax.f32 %v1101, 0.0
  %v1162 = vmax.f32 %v1102, 0.0
  %v1163 = vmax.f32 %v1103, 0.0
  %v1164 = vmax.f32 %v1104, 0.0
  %v1165 = vmax.f32 %v1105, 0.0
  %v1166 = vmax.f32 %v1106, 0.0
  %v1167 = vmax.f32 %v1107, 0.0
  %v1168 = vmax.f32 %v1108, 0.0
  %v1169 = vmax.f32 %v1109, 0.0
  %v1170 = vmax.f32 %v1110, 0.0
  %v1171 = vmax.f32 %v1111, 0.0
  %v1172 = vmax.f32 %v1112, 0.0
  %v1173 = vmax.f32 %v1113, 0.0
  %v1174 = vmax.f32 %v1114, 0.0
  %v1175 = vmax.f32 %v1115, 0.0
  %v1176 = vmax.f32 %v1116, 0.0
  %v1177 = vmax.f32 %v1117, 0.0
  %v1178 = vmax.f32 %v1118, 0.0
  %v1179 = vmax.f32 %v1119, 0.0
  %v1180 = vmax.f32 %v1120, %v1121
  %v1181 = vmax.f32 %v1122, %v1123
  %v1182 = vmax.f32 %v1124, %v1125
  %v1183 = vmax.f32 %v1126, %v1127
  %v1184 = vmax.f32 %v1128, %v1129
  %v1185 = vmax.f32 %v1130, %v1131
  %v1186 = vmax.f32 %v1132, %v1133
  %v1187 = vmax.f32 %v1134, %v1135
  %v1188 = vmax.f32 %v1136, %v1137
  %v1189 = vmax.f32 %v1138, %v1139
  %v1190 = vmax.f32 %v1140, %v1141
  %v1191 = vmax.f32 %v1142, %v1143
  %v1192 = vmax.f32 %v1144, %v1145
  %v1193 = vmax.f32 %v1146, %v1147
  %v1194 = vmax.f32 %v1148, %v1149
  %v1195 = vmax.f32 %v1150, %v1151
  %v1196 = vmax.f32 %v1152, %v1153
  %v1197 = vmax.f32 %v1154, %v1155
  %v1198 = vmax.f32 %v1156, %v1157
  %v1199 = vmax.f32 %v1158, %v1159
  %v1200 = vmax.f32 %v1160, %v1161
  %v1201 = vmax.f32 %v1162, %v1163
  %v1202 = vmax.f32 %v1164, %v1165
  %v1203 = vmax.f32 %v1166, %v1167
  %v1204 = vmax.f32 %v1168, %v1169
  %v1205 = vmax.f32 %v1170, %v1171
  %v1206 = vmax.f32 %v1172, %v1173
  %v1207 = vmax.f32 %v1174, %v1175
  %v1208 = vmax.f32 %v1176, %v1177
  %v1209 = vmax.f32 %v1178, %v1179
  %v1210 = vpack.c.bf16 %v1181, %v1180
  %v1211 = vpack.c.bf16 %v1183, %v1182
  %v1212 = vpack.c.bf16 %v1185, %v1184
  %v1213 = vpack.c.bf16 %v1187, %v1186
  %v1214 = vpack.c.bf16 %v1189, %v1188
  %v1215 = vpack.c.bf16 %v1191, %v1190
  %v1216 = vpack.c.bf16 %v1193, %v1192
  %v1217 = vpack.c.bf16 %v1195, %v1194
  %v1218 = vpack.c.bf16 %v1197, %v1196
  %v1219 = vpack.c.bf16 %v1199, %v1198
  %v1220 = vpack.c.bf16 %v1201, %v1200
  %v1221 = vpack.c.bf16 %v1203, %v1202
  %v1222 = vpack.c.bf16 %v1205, %v1204
  %v1223 = vpack.c.bf16 %v1207, %v1206
  %v1224 = vpack.c.bf16 %v1209, %v1208
  %v1225 = vld [vmem:[%s3] sm:$0xff]
  %v1226 = vld [vmem:[%s3 + $0x8] sm:$0xff]
  %v1227 = vld [vmem:[%s3 + $0x10] sm:$0xff]
  %v1228 = vld [vmem:[%s3 + $0x18] sm:$0xff]
  %v1229 = vld [vmem:[%s3 + $0x20] sm:$0xff]
  %v1230 = vld [vmem:[%s3 + $0x28] sm:$0xff]
  %v1231 = vld [vmem:[%s3 + $0x30] sm:$0xff]
  %v1232 = vld [vmem:[%s3 + $0x38] sm:$0xff]
  %v1233 = vld [vmem:[%s3 + $0x40] sm:$0xff]
  %v1234 = vld [vmem:[%s3 + $0x48] sm:$0xff]
  %v1235 = vld [vmem:[%s3 + $0x50] sm:$0xff]
  %v1236 = vld [vmem:[%s3 + $0x58] sm:$0xff]
  %v1237 = vld [vmem:[%s3 + $0x60] sm:$0xff]
  %v1238 = vld [vmem:[%s3 + $0x68] sm:$0xff]
  %v1239 = vld [vmem:[%s3 + $0x70] sm:$0xff]
  %v1240 = vld [vmem:[%s3 + $0x78] sm:$0xff]
  %v1257 = vunpack.c.l.b16 %v1225
  %v1258 = vunpack.c.h.b16 %v1225
  %v1259 = vunpack.c.l.b16 %v1226
  %v1260 = vunpack.c.h.b16 %v1226
  %v1261 = vunpack.c.l.b16 %v1227
  %v1262 = vunpack.c.h.b16 %v1227
  %v1263 = vunpack.c.l.b16 %v1228
  %v1264 = vunpack.c.h.b16 %v1228
  %v1265 = vunpack.c.l.b16 %v1229
  %v1266 = vunpack.c.h.b16 %v1229
  %v1267 = vunpack.c.l.b16 %v1230
  %v1268 = vunpack.c.h.b16 %v1230
  %v1269 = vunpack.c.l.b16 %v1231
  %v1270 = vunpack.c.h.b16 %v1231
  %v1271 = vunpack.c.l.b16 %v1232
  %v1272 = vunpack.c.h.b16 %v1232
  %v1273 = vunpack.c.l.b16 %v1233
  %v1274 = vunpack.c.h.b16 %v1233
  %v1275 = vunpack.c.l.b16 %v1234
  %v1276 = vunpack.c.h.b16 %v1234
  %v1277 = vunpack.c.l.b16 %v1235
  %v1278 = vunpack.c.h.b16 %v1235
  %v1279 = vunpack.c.l.b16 %v1236
  %v1280 = vunpack.c.h.b16 %v1236
  %v1281 = vunpack.c.l.b16 %v1237
  %v1282 = vunpack.c.h.b16 %v1237
  %v1283 = vunpack.c.l.b16 %v1238
  %v1284 = vunpack.c.h.b16 %v1238
  %v1285 = vunpack.c.l.b16 %v1239
  %v1286 = vunpack.c.h.b16 %v1239
  %v1287 = vunpack.c.l.b16 %v1240
  %v1288 = vunpack.c.h.b16 %v1240
  %v1289 = vpack.c.b16 %v1259, %v1257
  %v1290 = vpack.c.b16 %v1260, %v1258
  %v1291 = vpack.c.b16 %v1263, %v1261
  %v1292 = vpack.c.b16 %v1264, %v1262
  %v1293 = vpack.c.b16 %v1267, %v1265
  %v1294 = vpack.c.b16 %v1268, %v1266
  %v1295 = vpack.c.b16 %v1271, %v1269
  %v1296 = vpack.c.b16 %v1272, %v1270
  %v1297 = vpack.c.b16 %v1275, %v1273
  %v1298 = vpack.c.b16 %v1276, %v1274
  %v1299 = vpack.c.b16 %v1279, %v1277
  %v1300 = vpack.c.b16 %v1280, %v1278
  %v1301 = vpack.c.b16 %v1283, %v1281
  %v1302 = vpack.c.b16 %v1284, %v1282
  %v1303 = vpack.c.b16 %v1287, %v1285
  %v1304 = vpack.c.b16 %v1288, %v1286
  %vm1313 = vcmask 900096
  %v1315 = vsel %vm1313, %v1290, 0
  %v1318 = vsel %vm1313, %v1292, 0
  %v1321 = vsel %vm1313, %v1294, 0
  %v1324 = vsel %vm1313, %v1296, 0
  %v1327 = vsel %vm1313, %v1298, 0
  %v1330 = vsel %vm1313, %v1300, 0
  %v1333 = vsel %vm1313, %v1302, 0
  %v1336 = vsel %vm1313, %v1304, 0
  %v1339 = vsel %vm317, %v1224, 0
  %1341 = vmatpush.bf16.msra.mxu0 %v1217
  %1342 = vmatpush.bf16.msra.mxu0 %v1216
  %1343 = vmatpush.bf16.msra.mxu0 %v1215
  %1344 = vmatpush.bf16.msra.mxu0 %v1214
  %1345 = vmatpush.bf16.msra.mxu0 %v1213
  %1346 = vmatpush.bf16.msra.mxu0 %v1212
  %1347 = vmatpush.bf16.msra.mxu0 %v1211
  %1348 = vmatpush.bf16.msra.mxu0 %v1210
  %1349 = vmatmul.bf16.gmra.mxu0 %v1289
  %v1350 = vpop.f32.mrf.mxu0
  %v1351 = vadd.f32 0.0, %v1350
  %v1352 = vpop.f32.mrf.mxu0
  %v1353 = vadd.f32 0.0, %v1352
  %1354 = vmatmul.bf16.gmra.mxu0 %v1291
  %v1355 = vpop.f32.mrf.mxu0
  %v1356 = vadd.f32 0.0, %v1355
  %v1357 = vpop.f32.mrf.mxu0
  %v1358 = vadd.f32 0.0, %v1357
  %1359 = vmatmul.bf16.gmra.mxu0 %v1293
  %v1360 = vpop.f32.mrf.mxu0
  %v1361 = vadd.f32 0.0, %v1360
  %v1362 = vpop.f32.mrf.mxu0
  %v1363 = vadd.f32 0.0, %v1362
  %1364 = vmatmul.bf16.gmra.mxu0 %v1295
  %v1365 = vpop.f32.mrf.mxu0
  %v1366 = vadd.f32 0.0, %v1365
  %v1367 = vpop.f32.mrf.mxu0
  %v1368 = vadd.f32 0.0, %v1367
  %1369 = vmatmul.bf16.gmra.mxu0 %v1297
  %v1370 = vpop.f32.mrf.mxu0
  %v1371 = vadd.f32 0.0, %v1370
  %v1372 = vpop.f32.mrf.mxu0
  %v1373 = vadd.f32 0.0, %v1372
  %1374 = vmatmul.bf16.gmra.mxu0 %v1299
  %v1375 = vpop.f32.mrf.mxu0
  %v1376 = vadd.f32 0.0, %v1375
  %v1377 = vpop.f32.mrf.mxu0
  %v1378 = vadd.f32 0.0, %v1377
  %1379 = vmatmul.bf16.gmra.mxu0 %v1301
  %v1380 = vpop.f32.mrf.mxu0
  %v1381 = vadd.f32 0.0, %v1380
  %v1382 = vpop.f32.mrf.mxu0
  %v1383 = vadd.f32 0.0, %v1382
  %1384 = vmatmul.bf16.gmra.mxu0 %v1303
  %v1385 = vpop.f32.mrf.mxu0
  %v1386 = vadd.f32 0.0, %v1385
  %v1387 = vpop.f32.mrf.mxu0
  %v1388 = vadd.f32 0.0, %v1387
  %1389 = vdwg.mxu0
  %1390 = vmatpush.bf16.msra.mxu0 0
  %1391 = vmatpush.bf16.msra.mxu0 %v1339
  %1392 = vmatpush.bf16.msra.mxu0 %v1223
  %1393 = vmatpush.bf16.msra.mxu0 %v1222
  %1394 = vmatpush.bf16.msra.mxu0 %v1221
  %1395 = vmatpush.bf16.msra.mxu0 %v1220
  %1396 = vmatpush.bf16.msra.mxu0 %v1219
  %1397 = vmatpush.bf16.msra.mxu0 %v1218
  %1398 = vmatmul.bf16.gmra.mxu0 %v1315
  %v1399 = vpop.f32.mrf.mxu0
  %v1400 = vadd.f32 %v1351, %v1399
  %v1401 = vpop.f32.mrf.mxu0
  %v1402 = vadd.f32 %v1353, %v1401
  %1403 = vmatmul.bf16.gmra.mxu0 %v1318
  %v1404 = vpop.f32.mrf.mxu0
  %v1405 = vadd.f32 %v1356, %v1404
  %v1406 = vpop.f32.mrf.mxu0
  %v1407 = vadd.f32 %v1358, %v1406
  %1408 = vmatmul.bf16.gmra.mxu0 %v1321
  %v1409 = vpop.f32.mrf.mxu0
  %v1410 = vadd.f32 %v1361, %v1409
  %v1411 = vpop.f32.mrf.mxu0
  %v1412 = vadd.f32 %v1363, %v1411
  %1413 = vmatmul.bf16.gmra.mxu0 %v1324
  %v1414 = vpop.f32.mrf.mxu0
  %v1415 = vadd.f32 %v1366, %v1414
  %v1416 = vpop.f32.mrf.mxu0
  %v1417 = vadd.f32 %v1368, %v1416
  %1418 = vmatmul.bf16.gmra.mxu0 %v1327
  %v1419 = vpop.f32.mrf.mxu0
  %v1420 = vadd.f32 %v1371, %v1419
  %v1421 = vpop.f32.mrf.mxu0
  %v1422 = vadd.f32 %v1373, %v1421
  %1423 = vmatmul.bf16.gmra.mxu0 %v1330
  %v1424 = vpop.f32.mrf.mxu0
  %v1425 = vadd.f32 %v1376, %v1424
  %v1426 = vpop.f32.mrf.mxu0
  %v1427 = vadd.f32 %v1378, %v1426
  %1428 = vmatmul.bf16.gmra.mxu0 %v1333
  %v1429 = vpop.f32.mrf.mxu0
  %v1430 = vadd.f32 %v1381, %v1429
  %v1431 = vpop.f32.mrf.mxu0
  %v1432 = vadd.f32 %v1383, %v1431
  %1433 = vmatmul.bf16.gmra.mxu0 %v1336
  %v1434 = vpop.f32.mrf.mxu0
  %v1435 = vadd.f32 %v1386, %v1434
  %v1436 = vpop.f32.mrf.mxu0
  %v1437 = vadd.f32 %v1388, %v1436
  %1438 = vdwg.mxu0
  %s1439 = scalar_lea.vmem %s3, 128
  %v1440 = vld [vmem:[%s1439] sm:$0xff]
  %v1441 = vld [vmem:[%s1439 + $0x8] sm:$0xff]
  %v1442 = vld [vmem:[%s1439 + $0x10] sm:$0xff]
  %v1443 = vld [vmem:[%s1439 + $0x18] sm:$0xff]
  %v1444 = vld [vmem:[%s1439 + $0x20] sm:$0xff]
  %v1445 = vld [vmem:[%s1439 + $0x28] sm:$0xff]
  %v1446 = vld [vmem:[%s1439 + $0x30] sm:$0xff]
  %v1447 = vld [vmem:[%s1439 + $0x38] sm:$0xff]
  %v1448 = vld [vmem:[%s1439 + $0x40] sm:$0xff]
  %v1449 = vld [vmem:[%s1439 + $0x48] sm:$0xff]
  %v1450 = vld [vmem:[%s1439 + $0x50] sm:$0xff]
  %v1451 = vld [vmem:[%s1439 + $0x58] sm:$0xff]
  %v1452 = vld [vmem:[%s1439 + $0x60] sm:$0xff]
  %v1453 = vld [vmem:[%s1439 + $0x68] sm:$0xff]
  %v1454 = vld [vmem:[%s1439 + $0x70] sm:$0xff]
  %v1455 = vld [vmem:[%s1439 + $0x78] sm:$0xff]
  %v1472 = vunpack.c.l.b16 %v1440
  %v1473 = vunpack.c.h.b16 %v1440
  %v1474 = vunpack.c.l.b16 %v1441
  %v1475 = vunpack.c.h.b16 %v1441
  %v1476 = vunpack.c.l.b16 %v1442
  %v1477 = vunpack.c.h.b16 %v1442
  %v1478 = vunpack.c.l.b16 %v1443
  %v1479 = vunpack.c.h.b16 %v1443
  %v1480 = vunpack.c.l.b16 %v1444
  %v1481 = vunpack.c.h.b16 %v1444
  %v1482 = vunpack.c.l.b16 %v1445
  %v1483 = vunpack.c.h.b16 %v1445
  %v1484 = vunpack.c.l.b16 %v1446
  %v1485 = vunpack.c.h.b16 %v1446
  %v1486 = vunpack.c.l.b16 %v1447
  %v1487 = vunpack.c.h.b16 %v1447
  %v1488 = vunpack.c.l.b16 %v1448
  %v1489 = vunpack.c.h.b16 %v1448
  %v1490 = vunpack.c.l.b16 %v1449
  %v1491 = vunpack.c.h.b16 %v1449
  %v1492 = vunpack.c.l.b16 %v1450
  %v1493 = vunpack.c.h.b16 %v1450
  %v1494 = vunpack.c.l.b16 %v1451
  %v1495 = vunpack.c.h.b16 %v1451
  %v1496 = vunpack.c.l.b16 %v1452
  %v1497 = vunpack.c.h.b16 %v1452
  %v1498 = vunpack.c.l.b16 %v1453
  %v1499 = vunpack.c.h.b16 %v1453
  %v1500 = vunpack.c.l.b16 %v1454
  %v1501 = vunpack.c.h.b16 %v1454
  %v1502 = vunpack.c.l.b16 %v1455
  %v1503 = vunpack.c.h.b16 %v1455
  %v1504 = vpack.c.b16 %v1474, %v1472
  %v1505 = vpack.c.b16 %v1475, %v1473
  %v1506 = vpack.c.b16 %v1478, %v1476
  %v1507 = vpack.c.b16 %v1479, %v1477
  %v1508 = vpack.c.b16 %v1482, %v1480
  %v1509 = vpack.c.b16 %v1483, %v1481
  %v1510 = vpack.c.b16 %v1486, %v1484
  %v1511 = vpack.c.b16 %v1487, %v1485
  %v1512 = vpack.c.b16 %v1490, %v1488
  %v1513 = vpack.c.b16 %v1491, %v1489
  %v1514 = vpack.c.b16 %v1494, %v1492
  %v1515 = vpack.c.b16 %v1495, %v1493
  %v1516 = vpack.c.b16 %v1498, %v1496
  %v1517 = vpack.c.b16 %v1499, %v1497
  %v1518 = vpack.c.b16 %v1502, %v1500
  %v1519 = vpack.c.b16 %v1503, %v1501
  %v1529 = vsel %vm1313, %v1505, 0
  %v1532 = vsel %vm1313, %v1507, 0
  %v1535 = vsel %vm1313, %v1509, 0
  %v1538 = vsel %vm1313, %v1511, 0
  %v1541 = vsel %vm1313, %v1513, 0
  %v1544 = vsel %vm1313, %v1515, 0
  %v1547 = vsel %vm1313, %v1517, 0
  %v1550 = vsel %vm1313, %v1519, 0
  %1552 = vmatpush.bf16.msra.mxu0 %v1217
  %1553 = vmatpush.bf16.msra.mxu0 %v1216
  %1554 = vmatpush.bf16.msra.mxu0 %v1215
  %1555 = vmatpush.bf16.msra.mxu0 %v1214
  %1556 = vmatpush.bf16.msra.mxu0 %v1213
  %1557 = vmatpush.bf16.msra.mxu0 %v1212
  %1558 = vmatpush.bf16.msra.mxu0 %v1211
  %1559 = vmatpush.bf16.msra.mxu0 %v1210
  %1560 = vmatmul.bf16.gmra.mxu0 %v1504
  %v1561 = vpop.f32.mrf.mxu0
  %v1562 = vadd.f32 0.0, %v1561
  %v1563 = vpop.f32.mrf.mxu0
  %v1564 = vadd.f32 0.0, %v1563
  %1565 = vmatmul.bf16.gmra.mxu0 %v1506
  %v1566 = vpop.f32.mrf.mxu0
  %v1567 = vadd.f32 0.0, %v1566
  %v1568 = vpop.f32.mrf.mxu0
  %v1569 = vadd.f32 0.0, %v1568
  %1570 = vmatmul.bf16.gmra.mxu0 %v1508
  %v1571 = vpop.f32.mrf.mxu0
  %v1572 = vadd.f32 0.0, %v1571
  %v1573 = vpop.f32.mrf.mxu0
  %v1574 = vadd.f32 0.0, %v1573
  %1575 = vmatmul.bf16.gmra.mxu0 %v1510
  %v1576 = vpop.f32.mrf.mxu0
  %v1577 = vadd.f32 0.0, %v1576
  %v1578 = vpop.f32.mrf.mxu0
  %v1579 = vadd.f32 0.0, %v1578
  %1580 = vmatmul.bf16.gmra.mxu0 %v1512
  %v1581 = vpop.f32.mrf.mxu0
  %v1582 = vadd.f32 0.0, %v1581
  %v1583 = vpop.f32.mrf.mxu0
  %v1584 = vadd.f32 0.0, %v1583
  %1585 = vmatmul.bf16.gmra.mxu0 %v1514
  %v1586 = vpop.f32.mrf.mxu0
  %v1587 = vadd.f32 0.0, %v1586
  %v1588 = vpop.f32.mrf.mxu0
  %v1589 = vadd.f32 0.0, %v1588
  %1590 = vmatmul.bf16.gmra.mxu0 %v1516
  %v1591 = vpop.f32.mrf.mxu0
  %v1592 = vadd.f32 0.0, %v1591
  %v1593 = vpop.f32.mrf.mxu0
  %v1594 = vadd.f32 0.0, %v1593
  %1595 = vmatmul.bf16.gmra.mxu0 %v1518
  %v1596 = vpop.f32.mrf.mxu0
  %v1597 = vadd.f32 0.0, %v1596
  %v1598 = vpop.f32.mrf.mxu0
  %v1599 = vadd.f32 0.0, %v1598
  %1600 = vdwg.mxu0
  %1601 = vmatpush.bf16.msra.mxu0 0
  %1602 = vmatpush.bf16.msra.mxu0 %v1339
  %1603 = vmatpush.bf16.msra.mxu0 %v1223
  %1604 = vmatpush.bf16.msra.mxu0 %v1222
  %1605 = vmatpush.bf16.msra.mxu0 %v1221
  %1606 = vmatpush.bf16.msra.mxu0 %v1220
  %1607 = vmatpush.bf16.msra.mxu0 %v1219
  %1608 = vmatpush.bf16.msra.mxu0 %v1218
  %1609 = vmatmul.bf16.gmra.mxu0 %v1529
  %v1610 = vpop.f32.mrf.mxu0
  %v1611 = vadd.f32 %v1562, %v1610
  %v1612 = vpop.f32.mrf.mxu0
  %v1613 = vadd.f32 %v1564, %v1612
  %1614 = vmatmul.bf16.gmra.mxu0 %v1532
  %v1615 = vpop.f32.mrf.mxu0
  %v1616 = vadd.f32 %v1567, %v1615
  %v1617 = vpop.f32.mrf.mxu0
  %v1618 = vadd.f32 %v1569, %v1617
  %1619 = vmatmul.bf16.gmra.mxu0 %v1535
  %v1620 = vpop.f32.mrf.mxu0
  %v1621 = vadd.f32 %v1572, %v1620
  %v1622 = vpop.f32.mrf.mxu0
  %v1623 = vadd.f32 %v1574, %v1622
  %1624 = vmatmul.bf16.gmra.mxu0 %v1538
  %v1625 = vpop.f32.mrf.mxu0
  %v1626 = vadd.f32 %v1577, %v1625
  %v1627 = vpop.f32.mrf.mxu0
  %v1628 = vadd.f32 %v1579, %v1627
  %1629 = vmatmul.bf16.gmra.mxu0 %v1541
  %v1630 = vpop.f32.mrf.mxu0
  %v1631 = vadd.f32 %v1582, %v1630
  %v1632 = vpop.f32.mrf.mxu0
  %v1633 = vadd.f32 %v1584, %v1632
  %1634 = vmatmul.bf16.gmra.mxu0 %v1544
  %v1635 = vpop.f32.mrf.mxu0
  %v1636 = vadd.f32 %v1587, %v1635
  %v1637 = vpop.f32.mrf.mxu0
  %v1638 = vadd.f32 %v1589, %v1637
  %1639 = vmatmul.bf16.gmra.mxu0 %v1547
  %v1640 = vpop.f32.mrf.mxu0
  %v1641 = vadd.f32 %v1592, %v1640
  %v1642 = vpop.f32.mrf.mxu0
  %v1643 = vadd.f32 %v1594, %v1642
  %1644 = vmatmul.bf16.gmra.mxu0 %v1550
  %v1645 = vpop.f32.mrf.mxu0
  %v1646 = vadd.f32 %v1597, %v1645
  %v1647 = vpop.f32.mrf.mxu0
  %v1648 = vadd.f32 %v1599, %v1647
  %1649 = vdwg.mxu0
  %v1650 = vmax.f32 %v1400, %v1611
  %v1651 = vmax.f32 %v1402, %v1613
  %v1652 = vmax.f32 %v1405, %v1616
  %v1653 = vmax.f32 %v1407, %v1618
  %v1654 = vmax.f32 %v1410, %v1621
  %v1655 = vmax.f32 %v1412, %v1623
  %v1656 = vmax.f32 %v1415, %v1626
  %v1657 = vmax.f32 %v1417, %v1628
  %v1658 = vmax.f32 %v1420, %v1631
  %v1659 = vmax.f32 %v1422, %v1633
  %v1660 = vmax.f32 %v1425, %v1636
  %v1661 = vmax.f32 %v1427, %v1638
  %v1662 = vmax.f32 %v1430, %v1641
  %v1663 = vmax.f32 %v1432, %v1643
  %v1664 = vmax.f32 %v1435, %v1646
  %v1665 = vmax.f32 %v1437, %v1648
  %v1666 = vpack.c.bf16 %v1650, %v1650
  %v1667 = vpack.c.bf16 %v1651, %v1651
  %v1668 = vpack.c.bf16 %v1652, %v1652
  %v1669 = vpack.c.bf16 %v1653, %v1653
  %v1670 = vpack.c.bf16 %v1654, %v1654
  %v1671 = vpack.c.bf16 %v1655, %v1655
  %v1672 = vpack.c.bf16 %v1656, %v1656
  %v1673 = vpack.c.bf16 %v1657, %v1657
  %v1674 = vpack.c.bf16 %v1658, %v1658
  %v1675 = vpack.c.bf16 %v1659, %v1659
  %v1676 = vpack.c.bf16 %v1660, %v1660
  %v1677 = vpack.c.bf16 %v1661, %v1661
  %v1678 = vpack.c.bf16 %v1662, %v1662
  %v1679 = vpack.c.bf16 %v1663, %v1663
  %v1680 = vpack.c.bf16 %v1664, %v1664
  %v1681 = vpack.c.bf16 %v1665, %v1665
  %1682 = vst [vmem:[%s4] sm:$0xf] %v1666
  %1683 = vst [vmem:[%s4 + $0x4] sm:$0xf] %v1667
  %1684 = vst [vmem:[%s4 + $0x8] sm:$0xf] %v1668
  %1685 = vst [vmem:[%s4 + $0xc] sm:$0xf] %v1669
  %1686 = vst [vmem:[%s4 + $0x10] sm:$0xf] %v1670
  %1687 = vst [vmem:[%s4 + $0x14] sm:$0xf] %v1671
  %1688 = vst [vmem:[%s4 + $0x18] sm:$0xf] %v1672
  %1689 = vst [vmem:[%s4 + $0x1c] sm:$0xf] %v1673
  %1690 = vst [vmem:[%s4 + $0x20] sm:$0xf] %v1674
  %1691 = vst [vmem:[%s4 + $0x24] sm:$0xf] %v1675
  %1692 = vst [vmem:[%s4 + $0x28] sm:$0xf] %v1676
  %1693 = vst [vmem:[%s4 + $0x2c] sm:$0xf] %v1677
  %1694 = vst [vmem:[%s4 + $0x30] sm:$0xf] %v1678
  %1695 = vst [vmem:[%s4 + $0x34] sm:$0xf] %v1679
  %1696 = vst [vmem:[%s4 + $0x38] sm:$0xf] %v1680
  %1697 = vst [vmem:[%s4 + $0x3c] sm:$0xf] %v1681
  // Predicated region
  $region18: #{cnn_forward.3} parent=0 // pred_check
    _
  $region19: #{cnn_forward.3} parent=0 // pred_check_branch
    %1699 = sbr.rel (0) target = $region21
  $region20: #{cnn_forward.3} parent=0 // pred_region
    _
  $region21: #{cnn_forward.3} parent=0 // pred_fallthru
    _
  // Predicated region
  $region22: #{cnn_forward.3} parent=0 // pred_check
    _
  $region23: #{cnn_forward.3} parent=0 // pred_check_branch
    %1701 = sbr.rel (0) target = $region25
  $region24: #{cnn_forward.3} parent=0 // pred_region
    _
  $region25: #{cnn_forward.3} parent=0 // pred_fallthru
    _

</llo_original>
